<compile_context>
chip_gen: v6e
topology: v6e:2x2x1
jax: 0.10.0
libtpu: 0.0.40
codegen_flags: <defaults>
</compile_context>

<pallas_src>
import functools
import math

import numpy as np
import jax
import jax.numpy as jnp
from jax import lax
from jax.experimental import pallas as pl
from jax.experimental.pallas import tpu as pltpu
from jax.scipy.special import erf as _erf_exact

_LN_EPS = 1e-5
_SQRT_HALF = 0.7071067811865476
_NEG_BIG = 1e9


# ----------------------------------------------------------------------------
# Small helpers
# ----------------------------------------------------------------------------
def _is_f32(dt):
    return np.dtype(dt) == np.dtype(np.float32)


def _pick_tile(n, target, align):
    """Largest divisor of n that is <= target and a multiple of align, else n."""
    if n <= target:
        return n
    t = (min(target, n) // align) * align
    while t >= align:
        if n % t == 0:
            return t
        t -= align
    return n


def _cparams(semantics, est_bytes):
    limit = int(min(max(int(est_bytes), 32 * 1024 * 1024), 96 * 1024 * 1024))
    return pltpu.CompilerParams(dimension_semantics=semantics,
                                vmem_limit_bytes=limit)


# ----------------------------------------------------------------------------
# In-kernel math helpers
# ----------------------------------------------------------------------------
def _erf_approx(z, *, approx_recip):
    # Abramowitz & Stegun 7.1.26 rational approximation (|err| < 1.5e-7).
    a1, a2, a3, a4, a5 = (0.254829592, -0.284496736, 1.421413741,
                          -1.453152027, 1.061405429)
    p = 0.3275911
    sgn = jnp.where(z >= 0.0, 1.0, -1.0)
    za = jnp.abs(z)
    # Route the divide through the EUP in the fast path; exact divide otherwise.
    t = pl.reciprocal(1.0 + p * za, approx=approx_recip)
    poly = ((((a5 * t + a4) * t + a3) * t + a2) * t + a1) * t
    return sgn * (1.0 - poly * jnp.exp(-za * za))


def _gelu_inkernel(x, *, approx_recip):
    # torch.nn.GELU() default is the exact (erf) GELU.
    return 0.5 * x * (1.0 + _erf_approx(x * _SQRT_HALF, approx_recip=approx_recip))


# ----------------------------------------------------------------------------
# Fused EncoderBlock kernel
# ----------------------------------------------------------------------------
def _encoder_block_kernel(
    x_ref, nmask_ref,
    ln1g_ref, ln1b_ref,
    wq_ref, bq_ref, wv_ref, bv_ref,
    wo_ref, bo_ref,
    ln2g_ref, ln2b_ref,
    wf1_ref, bf1_ref, wf2_ref, bf2_ref,
    o_ref,
    *, n_heads, compute_dtype):
    f32 = jnp.float32
    approx_recip = not _is_f32(compute_dtype)
    Bb, C, D = x_ref.shape
    hs = D // n_heads
    # Reference quirk: scale uses the full model dim (x.shape[-1]), not head_size.
    scale = f32(1.0 / math.sqrt(D))

    x = x_ref[...].astype(f32)                      # (Bb, C, D)
    nmask = nmask_ref[...]                          # (Bb, 1, C) additive: 0 / -1e9
    x2 = x.reshape(Bb * C, D)

    # ---- LayerNorm (pre-attention) ----
    mu = jnp.mean(x2, axis=-1, keepdims=True)
    var = jnp.mean(jnp.square(x2 - mu), axis=-1, keepdims=True)
    xn = (x2 - mu) * lax.rsqrt(var + _LN_EPS)
    xn = xn * ln1g_ref[...] + ln1b_ref[...]

    # ---- fused (all heads, lane-dense) Q / V projections; K == Q (quirk) ----
    xn_c = xn.astype(compute_dtype)
    q = jnp.dot(xn_c, wq_ref[...], preferred_element_type=f32) + bq_ref[...]
    v = jnp.dot(xn_c, wv_ref[...], preferred_element_type=f32) + bv_ref[...]

    qs = (q * scale).astype(compute_dtype).reshape(Bb, C, D)  # scale folded into q
    kk = q.astype(compute_dtype).reshape(Bb, C, D)            # k == q (unscaled)
    vv = v.astype(compute_dtype).reshape(Bb, C, D)

    # ---- attention: static head loop, batch handled by dot_general batch dim ----
    head_outs = []
    for h in range(n_heads):
        sl = slice(h * hs, (h + 1) * hs)
        qh = qs[:, :, sl]                                         # (Bb, C, hs)
        kh = kk[:, :, sl]
        vh = vv[:, :, sl]
        # 'bqd,bkd->bqk' : contract feature axis, batch over Bb.
        s = lax.dot_general(qh, kh, (((2,), (2,)), ((0,), (0,))),
                            preferred_element_type=f32)           # (Bb, C, C)
        s = s + nmask                                             # additive mask
        m = jnp.max(s, axis=-1, keepdims=True)
        e = jnp.exp(s - m)
        denom = jnp.sum(e, axis=-1, keepdims=True)
        p = e * pl.reciprocal(denom, approx=approx_recip)
        # 'bqk,bkd->bqd'
        head_outs.append(
            lax.dot_general(p.astype(compute_dtype), vh,
                            (((2,), (1,)), ((0,), (0,))),
                            preferred_element_type=f32))          # (Bb, C, hs)
    att = jnp.concatenate(head_outs, axis=-1).reshape(Bb * C, D)

    # ---- attention output projection + residual ----
    proj = jnp.dot(att.astype(compute_dtype), wo_ref[...],
                   preferred_element_type=f32) + bo_ref[...]
    x_mid = x2 + proj

    # ---- LayerNorm (pre-FFN) ----
    mu2 = jnp.mean(x_mid, axis=-1, keepdims=True)
    var2 = jnp.mean(jnp.square(x_mid - mu2), axis=-1, keepdims=True)
    xn2 = (x_mid - mu2) * lax.rsqrt(var2 + _LN_EPS)
    xn2 = xn2 * ln2g_ref[...] + ln2b_ref[...]

    # ---- FFN: Linear(D,4D) -> exact GELU -> Linear(4D,D), + residual ----
    h1 = jnp.dot(xn2.astype(compute_dtype), wf1_ref[...],
                 preferred_element_type=f32) + bf1_ref[...]
    h1 = _gelu_inkernel(h1, approx_recip=approx_recip)
    h2 = jnp.dot(h1.astype(compute_dtype), wf2_ref[...],
                 preferred_element_type=f32) + bf2_ref[...]

    out = x_mid + h2
    o_ref[...] = out.reshape(Bb, C, D).astype(o_ref.dtype)


def _encoder_vmem_estimate(Bb, C, D, compute_dtype):
    wi = np.dtype(compute_dtype).itemsize
    rows = Bb * C
    weights = (3 * D * D + 8 * D * D) * wi                 # wq, wv, wo, wf1, wf2
    small = (12 * D) * 4                                   # biases + LN params
    io = (2 * rows * D + Bb * C) * 4                       # x in, out, mask
    acts = (3 * rows * 4 * D + 4 * Bb * C * C + 8 * rows * D) * 4
    return 2 * (weights + small + io) + acts + (4 << 20)


def encoder_block(x, addmask, layer, *, n_heads, compute_dtype=jnp.float32,
                  batch_block=None):
    """One EncoderBlock.

    x: (B, C, D) f32.  addmask: (B, 1, C) f32 additive mask (0 keep, -1e9 pad).
    """
    B, C, D = x.shape
    hs = D // n_heads
    HD = n_heads * hs
    # Default: one batch element per grid step -> >=2 parallel steps (megacore
    # on v7x + DMA/compute overlap).  Override for per-generation tile sizing.
    Bb = 1 if batch_block is None else batch_block
    assert B % Bb == 0
    grid = (B // Bb,)
    cd = compute_dtype

    # Host-side glue: fuse per-head Linears into lane-dense (D, H*hs) matmuls,
    # pre-transpose to (in, out), cast weights to compute_dtype (halves DMA in
    # the bf16 path), keep biases / LN params in f32 rows.
    wq_t = layer["wq"].reshape(HD, D).T.astype(cd)
    bq_r = layer["bq"].reshape(1, HD).astype(jnp.float32)
    wv_t = layer["wv"].reshape(HD, D).T.astype(cd)
    bv_r = layer["bv"].reshape(1, HD).astype(jnp.float32)
    wo_t = layer["w_res"].T.astype(cd)
    bo_r = layer["b_res"].reshape(1, D).astype(jnp.float32)
    wf1_t = layer["w_fc1"].T.astype(cd)
    bf1_r = layer["b_fc1"].reshape(1, 4 * D).astype(jnp.float32)
    wf2_t = layer["w_fc2"].T.astype(cd)
    bf2_r = layer["b_fc2"].reshape(1, D).astype(jnp.float32)
    ln1g = layer["ln1_g"].reshape(1, D).astype(jnp.float32)
    ln1b = layer["ln1_b"].reshape(1, D).astype(jnp.float32)
    ln2g = layer["ln2_g"].reshape(1, D).astype(jnp.float32)
    ln2b = layer["ln2_b"].reshape(1, D).astype(jnp.float32)

    xmap3 = lambda i: (i, 0, 0)
    rep2 = lambda i: (0, 0)
    in_specs = [
        pl.BlockSpec((Bb, C, D), xmap3),         # x
        pl.BlockSpec((Bb, 1, C), xmap3),         # additive mask
        pl.BlockSpec((1, D), rep2),              # ln1 gamma
        pl.BlockSpec((1, D), rep2),              # ln1 beta
        pl.BlockSpec((D, HD), rep2),             # Wq (all heads fused)
        pl.BlockSpec((1, HD), rep2),             # bq
        pl.BlockSpec((D, HD), rep2),             # Wv
        pl.BlockSpec((1, HD), rep2),             # bv
        pl.BlockSpec((HD, D), rep2),             # W_res
        pl.BlockSpec((1, D), rep2),              # b_res
        pl.BlockSpec((1, D), rep2),              # ln2 gamma
        pl.BlockSpec((1, D), rep2),              # ln2 beta
        pl.BlockSpec((D, 4 * D), rep2),          # W_fc1
        pl.BlockSpec((1, 4 * D), rep2),          # b_fc1
        pl.BlockSpec((4 * D, D), rep2),          # W_fc2
        pl.BlockSpec((1, D), rep2),              # b_fc2
    ]
    out_specs = pl.BlockSpec((Bb, C, D), xmap3)

    kernel = functools.partial(_encoder_block_kernel, n_heads=n_heads,
                               compute_dtype=cd)
    return pl.pallas_call(
        kernel,
        out_shape=jax.ShapeDtypeStruct((B, C, D), x.dtype),
        grid_spec=pltpu.PrefetchScalarGridSpec(
            num_scalar_prefetch=0, grid=grid,
            in_specs=in_specs, out_specs=out_specs),
        compiler_params=_cparams(("parallel",),
                                 _encoder_vmem_estimate(Bb, C, D, cd)),
    )(x, addmask, ln1g, ln1b, wq_t, bq_r, wv_t, bv_r, wo_t, bo_r,
      ln2g, ln2b, wf1_t, bf1_r, wf2_t, bf2_r)


# ----------------------------------------------------------------------------
# Output heads: tiled mslm (rows x vocab) + tiny nsp head
# ----------------------------------------------------------------------------
def _mslm_kernel(x_ref, w_ref, b_ref, o_ref, *, compute_dtype):
    out = jnp.dot(x_ref[...].astype(compute_dtype), w_ref[...],
                  preferred_element_type=jnp.float32) + b_ref[...]
    o_ref[...] = out.astype(o_ref.dtype)


def _nsp_kernel(x_ref, w_ref, b_ref, o_ref, *, compute_dtype):
    out = jnp.dot(x_ref[...].astype(compute_dtype), w_ref[...],
                  preferred_element_type=jnp.float32) + b_ref[...]
    o_ref[...] = out.astype(o_ref.dtype)


def output_heads(x, w_mslm, b_mslm, w_nsp, b_nsp, *, compute_dtype=jnp.float32):
    B, C, D = x.shape
    V = w_mslm.shape[0]
    R = B * C
    cd = compute_dtype
    wi = np.dtype(cd).itemsize

    # Tile rows and vocab; vocab tile lane-dense (multiple of 128) when possible.
    TM = _pick_tile(R, 256, 8)
    TN = _pick_tile(V, 512, 128)

    x2 = x.reshape(R, D)
    wm = w_mslm.T.astype(cd)
    bm = b_mslm.reshape(1, V).astype(jnp.float32)
    est = 2 * (TM * D * 4 + D * TN * wi + TN * 4 + TM * TN * 4) \
        + 2 * TM * TN * 4 + (2 << 20)
    logits2 = pl.pallas_call(
        functools.partial(_mslm_kernel, compute_dtype=cd),
        out_shape=jax.ShapeDtypeStruct((R, V), x.dtype),
        grid_spec=pltpu.PrefetchScalarGridSpec(
            num_scalar_prefetch=0,
            grid=(R // TM, V // TN),
            in_specs=[pl.BlockSpec((TM, D), lambda i, j: (i, 0)),
                      pl.BlockSpec((D, TN), lambda i, j: (0, j)),
                      pl.BlockSpec((1, TN), lambda i, j: (0, j))],
            out_specs=pl.BlockSpec((TM, TN), lambda i, j: (i, j))),
        compiler_params=_cparams(("parallel", "parallel"), est),
    )(x2, wm, bm)
    logits = logits2.reshape(B, C, V)

    cls = x[:, 0, :]                                   # (B, D)
    wn = w_nsp.T.astype(cd)
    bn = b_nsp.reshape(1, 2).astype(jnp.float32)
    nsp = pl.pallas_call(
        functools.partial(_nsp_kernel, compute_dtype=cd),
        out_shape=jax.ShapeDtypeStruct((B, 2), x.dtype),
        grid_spec=pltpu.PrefetchScalarGridSpec(
            num_scalar_prefetch=0, grid=(1,),
            in_specs=[pl.BlockSpec((B, D), lambda i: (0, 0)),
                      pl.BlockSpec((D, 2), lambda i: (0, 0)),
                      pl.BlockSpec((1, 2), lambda i: (0, 0))],
            out_specs=pl.BlockSpec((B, 2), lambda i: (0, 0))),
        compiler_params=_cparams(("arbitrary",), 4 << 20),
    )(cls, wn, bn)
    return logits, nsp


# ----------------------------------------------------------------------------
# Full Bert forward
# ----------------------------------------------------------------------------
def bert_forward(params, token_ids, seg_ids, *, n_heads,
                 compute_dtype=jnp.float32):
    B, C = token_ids.shape
    # Additive mask: 0 for real tokens, -1e9 for padding (token_id == 0).
    keep = (token_ids != 0).astype(jnp.float32).reshape(B, 1, C)
    addmask = (keep - 1.0) * _NEG_BIG
    # TODO(synk): nn.Embedding gathers (token/segment/position) are plain JAX glue;
    # a Pallas row-gather (PrefetchScalarGridSpec + pl.Element) is possible but not
    # worthwhile at these table sizes.
    h = (params["tok_emb"][token_ids]
         + params["seg_emb"][seg_ids]
         + params["pos_emb"][jnp.arange(C)][None, :, :]).astype(jnp.float32)
    for layer in params["layers"]:
        h = encoder_block(h, addmask, layer, n_heads=n_heads,
                          compute_dtype=compute_dtype)
    logits, nsp = output_heads(h, params["mslm_w"], params["mslm_b"],
                               params["nsp_w"], params["nsp_b"],
                               compute_dtype=compute_dtype)
    return logits, nsp


# ----------------------------------------------------------------------------
# Pure-JAX reference (mirrors the PyTorch module exactly, incl. its quirks)
# ----------------------------------------------------------------------------
def _layernorm_ref(x, g, b):
    mu = jnp.mean(x, axis=-1, keepdims=True)
    var = jnp.mean(jnp.square(x - mu), axis=-1, keepdims=True)
    return (x - mu) / jnp.sqrt(var + _LN_EPS) * g + b


def _gelu_ref(x):
    return 0.5 * x * (1.0 + _erf_exact(x * _SQRT_HALF))


def _bert_reference(params, token_ids, seg_ids, *, n_heads):
    B, C = token_ids.shape
    mask = (token_ids != 0).reshape(B, 1, C)
    h = (params["tok_emb"][token_ids]
         + params["seg_emb"][seg_ids]
         + params["pos_emb"][jnp.arange(C)][None, :, :])
    for layer in params["layers"]:
        D = h.shape[-1]
        ln1 = _layernorm_ref(h, layer["ln1_g"], layer["ln1_b"])
        heads = []
        for i in range(n_heads):
            q = ln1 @ layer["wq"][i].T + layer["bq"][i]
            k = ln1 @ layer["wq"][i].T + layer["bq"][i]   # quirk: k uses self.query
            v = ln1 @ layer["wv"][i].T + layer["bv"][i]
            score = (q @ jnp.swapaxes(k, -1, -2)) * (D ** -0.5)
            score = jnp.where(mask == 0, -_NEG_BIG, score)
            prob = jax.nn.softmax(score, axis=-1)
            heads.append(prob @ v)
        att = jnp.concatenate(heads, axis=-1) @ layer["w_res"].T + layer["b_res"]
        h = h + att
        ln2 = _layernorm_ref(h, layer["ln2_g"], layer["ln2_b"])
        ff = (_gelu_ref(ln2 @ layer["w_fc1"].T + layer["b_fc1"])
              @ layer["w_fc2"].T + layer["b_fc2"])
        h = h + ff
    logits = h @ params["mslm_w"].T + params["mslm_b"]
    nsp = h[:, 0] @ params["nsp_w"].T + params["nsp_b"]
    return logits, nsp


# ----------------------------------------------------------------------------
# Parameter construction (PyTorch-like layouts / init)
# ----------------------------------------------------------------------------
def init_params(key, *, vocab_size, context_length, d_k, n_heads, n_layers):
    hs = d_k // n_heads
    k_tok, k_seg, k_pos, k_mslm, k_nsp, k_layers = jax.random.split(key, 6)

    def uniform(k, shape, fan_in):
        bound = 1.0 / math.sqrt(fan_in)
        return jax.random.uniform(k, shape, jnp.float32, -bound, bound)

    layers = []
    for lk in jax.random.split(k_layers, n_layers):
        ks = jax.random.split(lk, 10)
        layers.append(dict(
            ln1_g=jnp.ones((d_k,), jnp.float32),
            ln1_b=jnp.zeros((d_k,), jnp.float32),
            wq=uniform(ks[0], (n_heads, hs, d_k), d_k),
            bq=uniform(ks[1], (n_heads, hs), d_k),
            # NOTE: the module also creates self.keys per head but forward never
            # uses it (k = self.query(x)); those parameters are omitted here.
            wv=uniform(ks[2], (n_heads, hs, d_k), d_k),
            bv=uniform(ks[3], (n_heads, hs), d_k),
            w_res=uniform(ks[4], (d_k, n_heads * hs), n_heads * hs),
            b_res=uniform(ks[5], (d_k,), n_heads * hs),
            ln2_g=jnp.ones((d_k,), jnp.float32),
            ln2_b=jnp.zeros((d_k,), jnp.float32),
            w_fc1=uniform(ks[6], (4 * d_k, d_k), d_k),
            b_fc1=uniform(ks[7], (4 * d_k,), d_k),
            w_fc2=uniform(ks[8], (d_k, 4 * d_k), 4 * d_k),
            b_fc2=uniform(ks[9], (d_k,), 4 * d_k),
        ))

    k_mw, k_mb = jax.random.split(k_mslm)
    k_nw, k_nb = jax.random.split(k_nsp)
    return dict(
        tok_emb=jax.random.normal(k_tok, (vocab_size, d_k), jnp.float32),
        seg_emb=jax.random.normal(k_seg, (3, d_k), jnp.float32),
        pos_emb=jax.random.normal(k_pos, (context_length, d_k), jnp.float32),
        layers=layers,
        mslm_w=uniform(k_mw, (vocab_size, d_k), d_k),
        mslm_b=uniform(k_mb, (vocab_size,), d_k),
        nsp_w=uniform(k_nw, (2, d_k), d_k),
        nsp_b=uniform(k_nb, (2,), d_k),
    )


if __name__ == "__main__":
    key = jax.random.PRNGKey(0)
    B, C = 2, 8
    vocab_size, context_length = 64, 16
    d_k, n_heads, n_layers = 32, 4, 2

    k_params, k_tok, k_seg = jax.random.split(key, 3)
    params = init_params(k_params, vocab_size=vocab_size,
                         context_length=context_length, d_k=d_k,
                         n_heads=n_heads, n_layers=n_layers)
    token_ids = jax.random.randint(k_tok, (B, C), 0, vocab_size, dtype=jnp.int32)
    token_ids = token_ids.at[0, -2:].set(0)      # some padding to exercise the mask
    seg_ids = jax.random.randint(k_seg, (B, C), 0, 3, dtype=jnp.int32)

    fwd = jax.jit(bert_forward, static_argnames=("n_heads", "compute_dtype"))

    # f32 MXU-operand path: tight check against the PyTorch-faithful reference.
    logits, nsp = fwd(params, token_ids, seg_ids, n_heads=n_heads)
    logits, nsp = jax.block_until_ready((logits, nsp))
    ref_logits, ref_nsp = _bert_reference(params, token_ids, seg_ids,
                                          n_heads=n_heads)
    assert logits.shape == (B, C, vocab_size) and nsp.shape == (B, 2)
    assert jnp.allclose(logits, ref_logits, atol=1e-4, rtol=1e-4), "logits mismatch (f32)"
    assert jnp.allclose(nsp, ref_nsp, atol=1e-4, rtol=1e-4), "nsp mismatch (f32)"

    # bf16 MXU-operand "production" path (recommended default on v5e/v6e/v7x):
    # bf16 operands, f32 accumulation, approx-reciprocal softmax/GELU divides.
    logits_bf, nsp_bf = fwd(params, token_ids, seg_ids, n_heads=n_heads,
                            compute_dtype=jnp.bfloat16)
    logits_bf, nsp_bf = jax.block_until_ready((logits_bf, nsp_bf))
    assert bool(jnp.all(jnp.isfinite(logits_bf)))
    assert jnp.allclose(logits_bf, ref_logits, atol=0.25, rtol=0.1), "logits mismatch (bf16)"
    assert jnp.allclose(nsp_bf, ref_nsp, atol=0.25, rtol=0.1), "nsp mismatch (bf16)"

    print("KERNEL_OK")
</pallas_src>

<mosaic_0001>
module attributes {stable_mosaic.version = 11 : i64} {
  func.func @_encoder_block_kernel(%arg0: i32, %arg1: memref<1x8x32xf32, #tpu.memory_space<vmem>>, %arg2: memref<1x1x8xf32, #tpu.memory_space<vmem>>, %arg3: memref<1x32xf32, #tpu.memory_space<vmem>>, %arg4: memref<1x32xf32, #tpu.memory_space<vmem>>, %arg5: memref<32x32xf32, #tpu.memory_space<vmem>>, %arg6: memref<1x32xf32, #tpu.memory_space<vmem>>, %arg7: memref<32x32xf32, #tpu.memory_space<vmem>>, %arg8: memref<1x32xf32, #tpu.memory_space<vmem>>, %arg9: memref<32x32xf32, #tpu.memory_space<vmem>>, %arg10: memref<1x32xf32, #tpu.memory_space<vmem>>, %arg11: memref<1x32xf32, #tpu.memory_space<vmem>>, %arg12: memref<1x32xf32, #tpu.memory_space<vmem>>, %arg13: memref<32x128xf32, #tpu.memory_space<vmem>>, %arg14: memref<1x128xf32, #tpu.memory_space<vmem>>, %arg15: memref<128x32xf32, #tpu.memory_space<vmem>>, %arg16: memref<1x32xf32, #tpu.memory_space<vmem>>, %arg17: memref<1x8x32xf32, #tpu.memory_space<vmem>>) attributes {dimension_semantics = [#tpu.dimension_semantics<parallel>], iteration_bounds = array<i64: 2>, scalar_prefetch = 0 : i64, scratch_operands = 0 : i64, tpu.core_type = #tpu.core_type<tc>, window_params = [{transform_indices = @transform_0, window_bounds = array<i64: 1, 8, 32>}, {transform_indices = @transform_1, window_bounds = array<i64: 1, 1, 8>}, {pipeline_mode = #tpu.pipeline_mode<synchronous>, transform_indices = @transform_2, window_bounds = array<i64: 1, 32>}, {pipeline_mode = #tpu.pipeline_mode<synchronous>, transform_indices = @transform_3, window_bounds = array<i64: 1, 32>}, {pipeline_mode = #tpu.pipeline_mode<synchronous>, transform_indices = @transform_4, window_bounds = array<i64: 32, 32>}, {pipeline_mode = #tpu.pipeline_mode<synchronous>, transform_indices = @transform_5, window_bounds = array<i64: 1, 32>}, {pipeline_mode = #tpu.pipeline_mode<synchronous>, transform_indices = @transform_6, window_bounds = array<i64: 32, 32>}, {pipeline_mode = #tpu.pipeline_mode<synchronous>, transform_indices = @transform_7, window_bounds = array<i64: 1, 32>}, {pipeline_mode = #tpu.pipeline_mode<synchronous>, transform_indices = @transform_8, window_bounds = array<i64: 32, 32>}, {pipeline_mode = #tpu.pipeline_mode<synchronous>, transform_indices = @transform_9, window_bounds = array<i64: 1, 32>}, {pipeline_mode = #tpu.pipeline_mode<synchronous>, transform_indices = @transform_10, window_bounds = array<i64: 1, 32>}, {pipeline_mode = #tpu.pipeline_mode<synchronous>, transform_indices = @transform_11, window_bounds = array<i64: 1, 32>}, {pipeline_mode = #tpu.pipeline_mode<synchronous>, transform_indices = @transform_12, window_bounds = array<i64: 32, 128>}, {pipeline_mode = #tpu.pipeline_mode<synchronous>, transform_indices = @transform_13, window_bounds = array<i64: 1, 128>}, {pipeline_mode = #tpu.pipeline_mode<synchronous>, transform_indices = @transform_14, window_bounds = array<i64: 128, 32>}, {pipeline_mode = #tpu.pipeline_mode<synchronous>, transform_indices = @transform_15, window_bounds = array<i64: 1, 32>}, {transform_indices = @transform_16, window_bounds = array<i64: 1, 8, 32>}]} {
    %c0 = arith.constant 0 : index
    %c0_0 = arith.constant 0 : index
    %c0_1 = arith.constant 0 : index
    %0 = vector.load %arg1[%c0, %c0_0, %c0_1] : memref<1x8x32xf32, #tpu.memory_space<vmem>>, vector<1x8x32xf32>
    %c0_2 = arith.constant 0 : index
    %c0_3 = arith.constant 0 : index
    %c0_4 = arith.constant 0 : index
    %1 = vector.load %arg2[%c0_2, %c0_3, %c0_4] : memref<1x1x8xf32, #tpu.memory_space<vmem>>, vector<1x1x8xf32>
    %2 = vector.shape_cast %0 : vector<1x8x32xf32> to vector<8x32xf32>
    %cst = arith.constant dense<0.000000e+00> : vector<8xf32>
    %3 = vector.multi_reduction <add>, %2, %cst [1] : vector<8x32xf32> to vector<8xf32>
    %4 = vector.shape_cast %3 : vector<8xf32> to vector<8x1xf32>
    %cst_5 = arith.constant 3.200000e+01 : f32
    %5 = vector.broadcast %cst_5 : f32 to vector<8x1xf32>
    %6 = arith.divf %4, %5 : vector<8x1xf32>
    %7 = vector.broadcast %6 : vector<8x1xf32> to vector<8x32xf32>
    %8 = arith.subf %2, %7 : vector<8x32xf32>
    %9 = arith.mulf %8, %8 : vector<8x32xf32>
    %cst_6 = arith.constant dense<0.000000e+00> : vector<8xf32>
    %10 = vector.multi_reduction <add>, %9, %cst_6 [1] : vector<8x32xf32> to vector<8xf32>
    %11 = vector.shape_cast %10 : vector<8xf32> to vector<8x1xf32>
    %cst_7 = arith.constant 3.200000e+01 : f32
    %12 = vector.broadcast %cst_7 : f32 to vector<8x1xf32>
    %13 = arith.divf %11, %12 : vector<8x1xf32>
    %14 = vector.broadcast %6 : vector<8x1xf32> to vector<8x32xf32>
    %15 = arith.subf %2, %14 : vector<8x32xf32>
    %cst_8 = arith.constant 9.99999974E-6 : f32
    %16 = vector.broadcast %cst_8 : f32 to vector<8x1xf32>
    %17 = arith.addf %13, %16 : vector<8x1xf32>
    %18 = math.rsqrt %17 : vector<8x1xf32>
    %19 = vector.broadcast %18 : vector<8x1xf32> to vector<8x32xf32>
    %20 = arith.mulf %15, %19 : vector<8x32xf32>
    %c0_9 = arith.constant 0 : index
    %c0_10 = arith.constant 0 : index
    %21 = vector.load %arg3[%c0_9, %c0_10] : memref<1x32xf32, #tpu.memory_space<vmem>>, vector<1x32xf32>
    %22 = vector.broadcast %21 : vector<1x32xf32> to vector<8x32xf32>
    %23 = arith.mulf %20, %22 : vector<8x32xf32>
    %c0_11 = arith.constant 0 : index
    %c0_12 = arith.constant 0 : index
    %24 = vector.load %arg4[%c0_11, %c0_12] : memref<1x32xf32, #tpu.memory_space<vmem>>, vector<1x32xf32>
    %25 = vector.broadcast %24 : vector<1x32xf32> to vector<8x32xf32>
    %26 = arith.addf %23, %25 : vector<8x32xf32>
    %c0_13 = arith.constant 0 : index
    %c0_14 = arith.constant 0 : index
    %27 = vector.load %arg5[%c0_13, %c0_14] : memref<32x32xf32, #tpu.memory_space<vmem>>, vector<32x32xf32>
    %cst_15 = arith.constant dense<0.000000e+00> : vector<8x32xf32>
    %28 = tpu.matmul %26, %27, %cst_15 {dimension_numbers = #tpu.dot_dimension_numbers<[1], [0], [0], [1], [0, 0, 1, 1], [], []>} : vector<8x32xf32>, vector<32x32xf32>, vector<8x32xf32> -> vector<8x32xf32>
    %c0_16 = arith.constant 0 : index
    %c0_17 = arith.constant 0 : index
    %29 = vector.load %arg6[%c0_16, %c0_17] : memref<1x32xf32, #tpu.memory_space<vmem>>, vector<1x32xf32>
    %30 = vector.broadcast %29 : vector<1x32xf32> to vector<8x32xf32>
    %31 = arith.addf %28, %30 : vector<8x32xf32>
    %c0_18 = arith.constant 0 : index
    %c0_19 = arith.constant 0 : index
    %32 = vector.load %arg7[%c0_18, %c0_19] : memref<32x32xf32, #tpu.memory_space<vmem>>, vector<32x32xf32>
    %cst_20 = arith.constant dense<0.000000e+00> : vector<8x32xf32>
    %33 = tpu.matmul %26, %32, %cst_20 {dimension_numbers = #tpu.dot_dimension_numbers<[1], [0], [0], [1], [0, 0, 1, 1], [], []>} : vector<8x32xf32>, vector<32x32xf32>, vector<8x32xf32> -> vector<8x32xf32>
    %c0_21 = arith.constant 0 : index
    %c0_22 = arith.constant 0 : index
    %34 = vector.load %arg8[%c0_21, %c0_22] : memref<1x32xf32, #tpu.memory_space<vmem>>, vector<1x32xf32>
    %35 = vector.broadcast %34 : vector<1x32xf32> to vector<8x32xf32>
    %36 = arith.addf %33, %35 : vector<8x32xf32>
    %cst_23 = arith.constant 0.176776692 : f32
    %37 = vector.broadcast %cst_23 : f32 to vector<8x32xf32>
    %38 = arith.mulf %31, %37 : vector<8x32xf32>
    %39 = vector.shape_cast %38 : vector<8x32xf32> to vector<1x8x32xf32>
    %40 = vector.shape_cast %31 : vector<8x32xf32> to vector<1x8x32xf32>
    %41 = vector.shape_cast %36 : vector<8x32xf32> to vector<1x8x32xf32>
    %42 = vector.extract_strided_slice %39 {offsets = [0, 0, 0], sizes = [1, 8, 8], strides = [1, 1, 1]} : vector<1x8x32xf32> to vector<1x8x8xf32>
    %43 = vector.extract_strided_slice %40 {offsets = [0, 0, 0], sizes = [1, 8, 8], strides = [1, 1, 1]} : vector<1x8x32xf32> to vector<1x8x8xf32>
    %44 = vector.extract_strided_slice %41 {offsets = [0, 0, 0], sizes = [1, 8, 8], strides = [1, 1, 1]} : vector<1x8x32xf32> to vector<1x8x8xf32>
    %cst_24 = arith.constant dense<0.000000e+00> : vector<1x8x8xf32>
    %45 = tpu.matmul %42, %43, %cst_24 {dimension_numbers = #tpu.dot_dimension_numbers<[2], [2], [1], [1], [0, 0, 0, 1, 1, 1], [0], [0]>} : vector<1x8x8xf32>, vector<1x8x8xf32>, vector<1x8x8xf32> -> vector<1x8x8xf32>
    %46 = vector.broadcast %1 : vector<1x1x8xf32> to vector<1x8x8xf32>
    %47 = arith.addf %45, %46 : vector<1x8x8xf32>
    %cst_25 = arith.constant dense<0xFF800000> : vector<1x8xf32>
    %48 = vector.multi_reduction <maximumf>, %47, %cst_25 [2] : vector<1x8x8xf32> to vector<1x8xf32>
    %49 = vector.shape_cast %48 : vector<1x8xf32> to vector<1x8x1xf32>
    %50 = vector.broadcast %49 : vector<1x8x1xf32> to vector<1x8x8xf32>
    %51 = arith.subf %47, %50 : vector<1x8x8xf32>
    %52 = math.exp %51 : vector<1x8x8xf32>
    %cst_26 = arith.constant dense<0.000000e+00> : vector<1x8xf32>
    %53 = vector.multi_reduction <add>, %52, %cst_26 [2] : vector<1x8x8xf32> to vector<1x8xf32>
    %54 = vector.shape_cast %53 : vector<1x8xf32> to vector<1x8x1xf32>
    %55 = tpu.reciprocal %54 : vector<1x8x1xf32> -> vector<1x8x1xf32>
    %56 = vector.broadcast %55 : vector<1x8x1xf32> to vector<1x8x8xf32>
    %57 = arith.mulf %52, %56 : vector<1x8x8xf32>
    %cst_27 = arith.constant dense<0.000000e+00> : vector<1x8x8xf32>
    %58 = tpu.matmul %57, %44, %cst_27 {dimension_numbers = #tpu.dot_dimension_numbers<[2], [1], [1], [2], [0, 0, 0, 1, 1, 2], [0], [0]>} : vector<1x8x8xf32>, vector<1x8x8xf32>, vector<1x8x8xf32> -> vector<1x8x8xf32>
    %59 = vector.extract_strided_slice %39 {offsets = [0, 0, 8], sizes = [1, 8, 8], strides = [1, 1, 1]} : vector<1x8x32xf32> to vector<1x8x8xf32>
    %60 = vector.extract_strided_slice %40 {offsets = [0, 0, 8], sizes = [1, 8, 8], strides = [1, 1, 1]} : vector<1x8x32xf32> to vector<1x8x8xf32>
    %61 = vector.extract_strided_slice %41 {offsets = [0, 0, 8], sizes = [1, 8, 8], strides = [1, 1, 1]} : vector<1x8x32xf32> to vector<1x8x8xf32>
    %cst_28 = arith.constant dense<0.000000e+00> : vector<1x8x8xf32>
    %62 = tpu.matmul %59, %60, %cst_28 {dimension_numbers = #tpu.dot_dimension_numbers<[2], [2], [1], [1], [0, 0, 0, 1, 1, 1], [0], [0]>} : vector<1x8x8xf32>, vector<1x8x8xf32>, vector<1x8x8xf32> -> vector<1x8x8xf32>
    %63 = vector.broadcast %1 : vector<1x1x8xf32> to vector<1x8x8xf32>
    %64 = arith.addf %62, %63 : vector<1x8x8xf32>
    %cst_29 = arith.constant dense<0xFF800000> : vector<1x8xf32>
    %65 = vector.multi_reduction <maximumf>, %64, %cst_29 [2] : vector<1x8x8xf32> to vector<1x8xf32>
    %66 = vector.shape_cast %65 : vector<1x8xf32> to vector<1x8x1xf32>
    %67 = vector.broadcast %66 : vector<1x8x1xf32> to vector<1x8x8xf32>
    %68 = arith.subf %64, %67 : vector<1x8x8xf32>
    %69 = math.exp %68 : vector<1x8x8xf32>
    %cst_30 = arith.constant dense<0.000000e+00> : vector<1x8xf32>
    %70 = vector.multi_reduction <add>, %69, %cst_30 [2] : vector<1x8x8xf32> to vector<1x8xf32>
    %71 = vector.shape_cast %70 : vector<1x8xf32> to vector<1x8x1xf32>
    %72 = tpu.reciprocal %71 : vector<1x8x1xf32> -> vector<1x8x1xf32>
    %73 = vector.broadcast %72 : vector<1x8x1xf32> to vector<1x8x8xf32>
    %74 = arith.mulf %69, %73 : vector<1x8x8xf32>
    %cst_31 = arith.constant dense<0.000000e+00> : vector<1x8x8xf32>
    %75 = tpu.matmul %74, %61, %cst_31 {dimension_numbers = #tpu.dot_dimension_numbers<[2], [1], [1], [2], [0, 0, 0, 1, 1, 2], [0], [0]>} : vector<1x8x8xf32>, vector<1x8x8xf32>, vector<1x8x8xf32> -> vector<1x8x8xf32>
    %76 = vector.extract_strided_slice %39 {offsets = [0, 0, 16], sizes = [1, 8, 8], strides = [1, 1, 1]} : vector<1x8x32xf32> to vector<1x8x8xf32>
    %77 = vector.extract_strided_slice %40 {offsets = [0, 0, 16], sizes = [1, 8, 8], strides = [1, 1, 1]} : vector<1x8x32xf32> to vector<1x8x8xf32>
    %78 = vector.extract_strided_slice %41 {offsets = [0, 0, 16], sizes = [1, 8, 8], strides = [1, 1, 1]} : vector<1x8x32xf32> to vector<1x8x8xf32>
    %cst_32 = arith.constant dense<0.000000e+00> : vector<1x8x8xf32>
    %79 = tpu.matmul %76, %77, %cst_32 {dimension_numbers = #tpu.dot_dimension_numbers<[2], [2], [1], [1], [0, 0, 0, 1, 1, 1], [0], [0]>} : vector<1x8x8xf32>, vector<1x8x8xf32>, vector<1x8x8xf32> -> vector<1x8x8xf32>
    %80 = vector.broadcast %1 : vector<1x1x8xf32> to vector<1x8x8xf32>
    %81 = arith.addf %79, %80 : vector<1x8x8xf32>
    %cst_33 = arith.constant dense<0xFF800000> : vector<1x8xf32>
    %82 = vector.multi_reduction <maximumf>, %81, %cst_33 [2] : vector<1x8x8xf32> to vector<1x8xf32>
    %83 = vector.shape_cast %82 : vector<1x8xf32> to vector<1x8x1xf32>
    %84 = vector.broadcast %83 : vector<1x8x1xf32> to vector<1x8x8xf32>
    %85 = arith.subf %81, %84 : vector<1x8x8xf32>
    %86 = math.exp %85 : vector<1x8x8xf32>
    %cst_34 = arith.constant dense<0.000000e+00> : vector<1x8xf32>
    %87 = vector.multi_reduction <add>, %86, %cst_34 [2] : vector<1x8x8xf32> to vector<1x8xf32>
    %88 = vector.shape_cast %87 : vector<1x8xf32> to vector<1x8x1xf32>
    %89 = tpu.reciprocal %88 : vector<1x8x1xf32> -> vector<1x8x1xf32>
    %90 = vector.broadcast %89 : vector<1x8x1xf32> to vector<1x8x8xf32>
    %91 = arith.mulf %86, %90 : vector<1x8x8xf32>
    %cst_35 = arith.constant dense<0.000000e+00> : vector<1x8x8xf32>
    %92 = tpu.matmul %91, %78, %cst_35 {dimension_numbers = #tpu.dot_dimension_numbers<[2], [1], [1], [2], [0, 0, 0, 1, 1, 2], [0], [0]>} : vector<1x8x8xf32>, vector<1x8x8xf32>, vector<1x8x8xf32> -> vector<1x8x8xf32>
    %93 = vector.extract_strided_slice %39 {offsets = [0, 0, 24], sizes = [1, 8, 8], strides = [1, 1, 1]} : vector<1x8x32xf32> to vector<1x8x8xf32>
    %94 = vector.extract_strided_slice %40 {offsets = [0, 0, 24], sizes = [1, 8, 8], strides = [1, 1, 1]} : vector<1x8x32xf32> to vector<1x8x8xf32>
    %95 = vector.extract_strided_slice %41 {offsets = [0, 0, 24], sizes = [1, 8, 8], strides = [1, 1, 1]} : vector<1x8x32xf32> to vector<1x8x8xf32>
    %cst_36 = arith.constant dense<0.000000e+00> : vector<1x8x8xf32>
    %96 = tpu.matmul %93, %94, %cst_36 {dimension_numbers = #tpu.dot_dimension_numbers<[2], [2], [1], [1], [0, 0, 0, 1, 1, 1], [0], [0]>} : vector<1x8x8xf32>, vector<1x8x8xf32>, vector<1x8x8xf32> -> vector<1x8x8xf32>
    %97 = vector.broadcast %1 : vector<1x1x8xf32> to vector<1x8x8xf32>
    %98 = arith.addf %96, %97 : vector<1x8x8xf32>
    %cst_37 = arith.constant dense<0xFF800000> : vector<1x8xf32>
    %99 = vector.multi_reduction <maximumf>, %98, %cst_37 [2] : vector<1x8x8xf32> to vector<1x8xf32>
    %100 = vector.shape_cast %99 : vector<1x8xf32> to vector<1x8x1xf32>
    %101 = vector.broadcast %100 : vector<1x8x1xf32> to vector<1x8x8xf32>
    %102 = arith.subf %98, %101 : vector<1x8x8xf32>
    %103 = math.exp %102 : vector<1x8x8xf32>
    %cst_38 = arith.constant dense<0.000000e+00> : vector<1x8xf32>
    %104 = vector.multi_reduction <add>, %103, %cst_38 [2] : vector<1x8x8xf32> to vector<1x8xf32>
    %105 = vector.shape_cast %104 : vector<1x8xf32> to vector<1x8x1xf32>
    %106 = tpu.reciprocal %105 : vector<1x8x1xf32> -> vector<1x8x1xf32>
    %107 = vector.broadcast %106 : vector<1x8x1xf32> to vector<1x8x8xf32>
    %108 = arith.mulf %103, %107 : vector<1x8x8xf32>
    %cst_39 = arith.constant dense<0.000000e+00> : vector<1x8x8xf32>
    %109 = tpu.matmul %108, %95, %cst_39 {dimension_numbers = #tpu.dot_dimension_numbers<[2], [1], [1], [2], [0, 0, 0, 1, 1, 2], [0], [0]>} : vector<1x8x8xf32>, vector<1x8x8xf32>, vector<1x8x8xf32> -> vector<1x8x8xf32>
    %110 = tpu.concatenate %58, %75, %92, %109 in 2 : vector<1x8x8xf32>, vector<1x8x8xf32>, vector<1x8x8xf32>, vector<1x8x8xf32> -> vector<1x8x32xf32>
    %111 = vector.shape_cast %110 : vector<1x8x32xf32> to vector<8x32xf32>
    %c0_40 = arith.constant 0 : index
    %c0_41 = arith.constant 0 : index
    %112 = vector.load %arg9[%c0_40, %c0_41] : memref<32x32xf32, #tpu.memory_space<vmem>>, vector<32x32xf32>
    %cst_42 = arith.constant dense<0.000000e+00> : vector<8x32xf32>
    %113 = tpu.matmul %111, %112, %cst_42 {dimension_numbers = #tpu.dot_dimension_numbers<[1], [0], [0], [1], [0, 0, 1, 1], [], []>} : vector<8x32xf32>, vector<32x32xf32>, vector<8x32xf32> -> vector<8x32xf32>
    %c0_43 = arith.constant 0 : index
    %c0_44 = arith.constant 0 : index
    %114 = vector.load %arg10[%c0_43, %c0_44] : memref<1x32xf32, #tpu.memory_space<vmem>>, vector<1x32xf32>
    %115 = vector.broadcast %114 : vector<1x32xf32> to vector<8x32xf32>
    %116 = arith.addf %113, %115 : vector<8x32xf32>
    %117 = arith.addf %2, %116 : vector<8x32xf32>
    %cst_45 = arith.constant dense<0.000000e+00> : vector<8xf32>
    %118 = vector.multi_reduction <add>, %117, %cst_45 [1] : vector<8x32xf32> to vector<8xf32>
    %119 = vector.shape_cast %118 : vector<8xf32> to vector<8x1xf32>
    %cst_46 = arith.constant 3.200000e+01 : f32
    %120 = vector.broadcast %cst_46 : f32 to vector<8x1xf32>
    %121 = arith.divf %119, %120 : vector<8x1xf32>
    %122 = vector.broadcast %121 : vector<8x1xf32> to vector<8x32xf32>
    %123 = arith.subf %117, %122 : vector<8x32xf32>
    %124 = arith.mulf %123, %123 : vector<8x32xf32>
    %cst_47 = arith.constant dense<0.000000e+00> : vector<8xf32>
    %125 = vector.multi_reduction <add>, %124, %cst_47 [1] : vector<8x32xf32> to vector<8xf32>
    %126 = vector.shape_cast %125 : vector<8xf32> to vector<8x1xf32>
    %cst_48 = arith.constant 3.200000e+01 : f32
    %127 = vector.broadcast %cst_48 : f32 to vector<8x1xf32>
    %128 = arith.divf %126, %127 : vector<8x1xf32>
    %129 = vector.broadcast %121 : vector<8x1xf32> to vector<8x32xf32>
    %130 = arith.subf %117, %129 : vector<8x32xf32>
    %cst_49 = arith.constant 9.99999974E-6 : f32
    %131 = vector.broadcast %cst_49 : f32 to vector<8x1xf32>
    %132 = arith.addf %128, %131 : vector<8x1xf32>
    %133 = math.rsqrt %132 : vector<8x1xf32>
    %134 = vector.broadcast %133 : vector<8x1xf32> to vector<8x32xf32>
    %135 = arith.mulf %130, %134 : vector<8x32xf32>
    %c0_50 = arith.constant 0 : index
    %c0_51 = arith.constant 0 : index
    %136 = vector.load %arg11[%c0_50, %c0_51] : memref<1x32xf32, #tpu.memory_space<vmem>>, vector<1x32xf32>
    %137 = vector.broadcast %136 : vector<1x32xf32> to vector<8x32xf32>
    %138 = arith.mulf %135, %137 : vector<8x32xf32>
    %c0_52 = arith.constant 0 : index
    %c0_53 = arith.constant 0 : index
    %139 = vector.load %arg12[%c0_52, %c0_53] : memref<1x32xf32, #tpu.memory_space<vmem>>, vector<1x32xf32>
    %140 = vector.broadcast %139 : vector<1x32xf32> to vector<8x32xf32>
    %141 = arith.addf %138, %140 : vector<8x32xf32>
    %c0_54 = arith.constant 0 : index
    %c0_55 = arith.constant 0 : index
    %142 = vector.load %arg13[%c0_54, %c0_55] : memref<32x128xf32, #tpu.memory_space<vmem>>, vector<32x128xf32>
    %cst_56 = arith.constant dense<0.000000e+00> : vector<8x128xf32>
    %143 = tpu.matmul %141, %142, %cst_56 {dimension_numbers = #tpu.dot_dimension_numbers<[1], [0], [0], [1], [0, 0, 1, 1], [], []>} : vector<8x32xf32>, vector<32x128xf32>, vector<8x128xf32> -> vector<8x128xf32>
    %c0_57 = arith.constant 0 : index
    %c0_58 = arith.constant 0 : index
    %144 = vector.load %arg14[%c0_57, %c0_58] : memref<1x128xf32, #tpu.memory_space<vmem>>, vector<1x128xf32>
    %145 = vector.broadcast %144 : vector<1x128xf32> to vector<8x128xf32>
    %146 = arith.addf %143, %145 : vector<8x128xf32>
    %cst_59 = arith.constant 5.000000e-01 : f32
    %147 = vector.broadcast %cst_59 : f32 to vector<8x128xf32>
    %148 = arith.mulf %147, %146 : vector<8x128xf32>
    %cst_60 = arith.constant 0.707106769 : f32
    %149 = vector.broadcast %cst_60 : f32 to vector<8x128xf32>
    %150 = arith.mulf %146, %149 : vector<8x128xf32>
    %cst_61 = arith.constant 0.000000e+00 : f32
    %151 = vector.broadcast %cst_61 : f32 to vector<8x128xf32>
    %152 = arith.cmpf oge, %150, %151 : vector<8x128xf32>
    %cst_62 = arith.constant 1.000000e+00 : f32
    %cst_63 = arith.constant -1.000000e+00 : f32
    %153 = vector.broadcast %cst_62 : f32 to vector<8x128xf32>
    %154 = vector.broadcast %cst_63 : f32 to vector<8x128xf32>
    %155 = arith.select %152, %153, %154 : vector<8x128xi1>, vector<8x128xf32>
    %156 = math.absf %150 : vector<8x128xf32>
    %cst_64 = arith.constant 0.327591091 : f32
    %157 = vector.broadcast %cst_64 : f32 to vector<8x128xf32>
    %158 = arith.mulf %157, %156 : vector<8x128xf32>
    %cst_65 = arith.constant 1.000000e+00 : f32
    %159 = vector.broadcast %cst_65 : f32 to vector<8x128xf32>
    %160 = arith.addf %159, %158 : vector<8x128xf32>
    %161 = tpu.reciprocal %160 : vector<8x128xf32> -> vector<8x128xf32>
    %cst_66 = arith.constant 1.06140542 : f32
    %162 = vector.broadcast %cst_66 : f32 to vector<8x128xf32>
    %163 = arith.mulf %162, %161 : vector<8x128xf32>
    %cst_67 = arith.constant -1.45315206 : f32
    %164 = vector.broadcast %cst_67 : f32 to vector<8x128xf32>
    %165 = arith.addf %163, %164 : vector<8x128xf32>
    %166 = arith.mulf %165, %161 : vector<8x128xf32>
    %cst_68 = arith.constant 1.42141378 : f32
    %167 = vector.broadcast %cst_68 : f32 to vector<8x128xf32>
    %168 = arith.addf %166, %167 : vector<8x128xf32>
    %169 = arith.mulf %168, %161 : vector<8x128xf32>
    %cst_69 = arith.constant -0.284496725 : f32
    %170 = vector.broadcast %cst_69 : f32 to vector<8x128xf32>
    %171 = arith.addf %169, %170 : vector<8x128xf32>
    %172 = arith.mulf %171, %161 : vector<8x128xf32>
    %cst_70 = arith.constant 0.254829586 : f32
    %173 = vector.broadcast %cst_70 : f32 to vector<8x128xf32>
    %174 = arith.addf %172, %173 : vector<8x128xf32>
    %175 = arith.mulf %174, %161 : vector<8x128xf32>
    %cst_71 = arith.constant 0.000000e+00 : f32
    %176 = vector.broadcast %cst_71 : f32 to vector<8x128xf32>
    %177 = arith.subf %176, %156 : vector<8x128xf32>
    %178 = arith.mulf %177, %156 : vector<8x128xf32>
    %179 = math.exp %178 : vector<8x128xf32>
    %180 = arith.mulf %175, %179 : vector<8x128xf32>
    %cst_72 = arith.constant 1.000000e+00 : f32
    %181 = vector.broadcast %cst_72 : f32 to vector<8x128xf32>
    %182 = arith.subf %181, %180 : vector<8x128xf32>
    %183 = arith.mulf %155, %182 : vector<8x128xf32>
    %cst_73 = arith.constant 1.000000e+00 : f32
    %184 = vector.broadcast %cst_73 : f32 to vector<8x128xf32>
    %185 = arith.addf %184, %183 : vector<8x128xf32>
    %186 = arith.mulf %148, %185 : vector<8x128xf32>
    %c0_74 = arith.constant 0 : index
    %c0_75 = arith.constant 0 : index
    %187 = vector.load %arg15[%c0_74, %c0_75] : memref<128x32xf32, #tpu.memory_space<vmem>>, vector<128x32xf32>
    %cst_76 = arith.constant dense<0.000000e+00> : vector<8x32xf32>
    %188 = tpu.matmul %186, %187, %cst_76 {dimension_numbers = #tpu.dot_dimension_numbers<[1], [0], [0], [1], [0, 0, 1, 1], [], []>} : vector<8x128xf32>, vector<128x32xf32>, vector<8x32xf32> -> vector<8x32xf32>
    %c0_77 = arith.constant 0 : index
    %c0_78 = arith.constant 0 : index
    %189 = vector.load %arg16[%c0_77, %c0_78] : memref<1x32xf32, #tpu.memory_space<vmem>>, vector<1x32xf32>
    %190 = vector.broadcast %189 : vector<1x32xf32> to vector<8x32xf32>
    %191 = arith.addf %188, %190 : vector<8x32xf32>
    %192 = arith.addf %117, %191 : vector<8x32xf32>
    %193 = vector.shape_cast %192 : vector<8x32xf32> to vector<1x8x32xf32>
    %c0_79 = arith.constant 0 : index
    %c0_80 = arith.constant 0 : index
    %c0_81 = arith.constant 0 : index
    %194 = vector.load %arg17[%c0_79, %c0_80, %c0_81] : memref<1x8x32xf32, #tpu.memory_space<vmem>>, vector<1x8x32xf32>
    tpu.vector_store %arg17[%c0_79, %c0_80, %c0_81], %193 {strides = array<i32>} : memref<1x8x32xf32, #tpu.memory_space<vmem>>, vector<1x8x32xf32>,
    return
  }
  func.func @transform_0(%arg0: i32) -> (i32, i32, i32) {
    %c0_i32 = arith.constant 0 : i32
    %c0_i32_0 = arith.constant 0 : i32
    %c0_i32_1 = arith.constant 0 : i32
    return %arg0, %c0_i32, %c0_i32_0 : i32, i32, i32
  }
  func.func @transform_1(%arg0: i32) -> (i32, i32, i32) {
    %c0_i32 = arith.constant 0 : i32
    %c0_i32_0 = arith.constant 0 : i32
    %c0_i32_1 = arith.constant 0 : i32
    return %arg0, %c0_i32, %c0_i32_0 : i32, i32, i32
  }
  func.func @transform_2(%arg0: i32) -> (i32, i32) {
    %c0_i32 = arith.constant 0 : i32
    %c0_i32_0 = arith.constant 0 : i32
    %c0_i32_1 = arith.constant 0 : i32
    return %c0_i32, %c0_i32_0 : i32, i32
  }
  func.func @transform_3(%arg0: i32) -> (i32, i32) {
    %c0_i32 = arith.constant 0 : i32
    %c0_i32_0 = arith.constant 0 : i32
    %c0_i32_1 = arith.constant 0 : i32
    return %c0_i32, %c0_i32_0 : i32, i32
  }
  func.func @transform_4(%arg0: i32) -> (i32, i32) {
    %c0_i32 = arith.constant 0 : i32
    %c0_i32_0 = arith.constant 0 : i32
    %c0_i32_1 = arith.constant 0 : i32
    return %c0_i32, %c0_i32_0 : i32, i32
  }
  func.func @transform_5(%arg0: i32) -> (i32, i32) {
    %c0_i32 = arith.constant 0 : i32
    %c0_i32_0 = arith.constant 0 : i32
    %c0_i32_1 = arith.constant 0 : i32
    return %c0_i32, %c0_i32_0 : i32, i32
  }
  func.func @transform_6(%arg0: i32) -> (i32, i32) {
    %c0_i32 = arith.constant 0 : i32
    %c0_i32_0 = arith.constant 0 : i32
    %c0_i32_1 = arith.constant 0 : i32
    return %c0_i32, %c0_i32_0 : i32, i32
  }
  func.func @transform_7(%arg0: i32) -> (i32, i32) {
    %c0_i32 = arith.constant 0 : i32
    %c0_i32_0 = arith.constant 0 : i32
    %c0_i32_1 = arith.constant 0 : i32
    return %c0_i32, %c0_i32_0 : i32, i32
  }
  func.func @transform_8(%arg0: i32) -> (i32, i32) {
    %c0_i32 = arith.constant 0 : i32
    %c0_i32_0 = arith.constant 0 : i32
    %c0_i32_1 = arith.constant 0 : i32
    return %c0_i32, %c0_i32_0 : i32, i32
  }
  func.func @transform_9(%arg0: i32) -> (i32, i32) {
    %c0_i32 = arith.constant 0 : i32
    %c0_i32_0 = arith.constant 0 : i32
    %c0_i32_1 = arith.constant 0 : i32
    return %c0_i32, %c0_i32_0 : i32, i32
  }
  func.func @transform_10(%arg0: i32) -> (i32, i32) {
    %c0_i32 = arith.constant 0 : i32
    %c0_i32_0 = arith.constant 0 : i32
    %c0_i32_1 = arith.constant 0 : i32
    return %c0_i32, %c0_i32_0 : i32, i32
  }
  func.func @transform_11(%arg0: i32) -> (i32, i32) {
    %c0_i32 = arith.constant 0 : i32
    %c0_i32_0 = arith.constant 0 : i32
    %c0_i32_1 = arith.constant 0 : i32
    return %c0_i32, %c0_i32_0 : i32, i32
  }
  func.func @transform_12(%arg0: i32) -> (i32, i32) {
    %c0_i32 = arith.constant 0 : i32
    %c0_i32_0 = arith.constant 0 : i32
    %c0_i32_1 = arith.constant 0 : i32
    return %c0_i32, %c0_i32_0 : i32, i32
  }
  func.func @transform_13(%arg0: i32) -> (i32, i32) {
    %c0_i32 = arith.constant 0 : i32
    %c0_i32_0 = arith.constant 0 : i32
    %c0_i32_1 = arith.constant 0 : i32
    return %c0_i32, %c0_i32_0 : i32, i32
  }
  func.func @transform_14(%arg0: i32) -> (i32, i32) {
    %c0_i32 = arith.constant 0 : i32
    %c0_i32_0 = arith.constant 0 : i32
    %c0_i32_1 = arith.constant 0 : i32
    return %c0_i32, %c0_i32_0 : i32, i32
  }
  func.func @transform_15(%arg0: i32) -> (i32, i32) {
    %c0_i32 = arith.constant 0 : i32
    %c0_i32_0 = arith.constant 0 : i32
    %c0_i32_1 = arith.constant 0 : i32
    return %c0_i32, %c0_i32_0 : i32, i32
  }
  func.func @transform_16(%arg0: i32) -> (i32, i32, i32) {
    %c0_i32 = arith.constant 0 : i32
    %c0_i32_0 = arith.constant 0 : i32
    %c0_i32_1 = arith.constant 0 : i32
    return %arg0, %c0_i32, %c0_i32_0 : i32, i32, i32
  }
}

module attributes {stable_mosaic.version = 11 : i64} {
  func.func @_mslm_kernel(%arg0: i32, %arg1: i32, %arg2: memref<16x32xf32, #tpu.memory_space<vmem>>, %arg3: memref<32x64xf32, #tpu.memory_space<vmem>>, %arg4: memref<1x64xf32, #tpu.memory_space<vmem>>, %arg5: memref<16x64xf32, #tpu.memory_space<vmem>>) attributes {dimension_semantics = [#tpu.dimension_semantics<parallel>, #tpu.dimension_semantics<parallel>], iteration_bounds = array<i64: 1, 1>, scalar_prefetch = 0 : i64, scratch_operands = 0 : i64, tpu.core_type = #tpu.core_type<tc>, window_params = [{transform_indices = @transform_0, window_bounds = array<i64: 16, 32>}, {transform_indices = @transform_1, window_bounds = array<i64: 32, 64>}, {transform_indices = @transform_2, window_bounds = array<i64: 1, 64>}, {transform_indices = @transform_3, window_bounds = array<i64: 16, 64>}]} {
    %c0 = arith.constant 0 : index
    %c0_0 = arith.constant 0 : index
    %0 = vector.load %arg2[%c0, %c0_0] : memref<16x32xf32, #tpu.memory_space<vmem>>, vector<16x32xf32>
    %c0_1 = arith.constant 0 : index
    %c0_2 = arith.constant 0 : index
    %1 = vector.load %arg3[%c0_1, %c0_2] : memref<32x64xf32, #tpu.memory_space<vmem>>, vector<32x64xf32>
    %cst = arith.constant dense<0.000000e+00> : vector<16x64xf32>
    %2 = tpu.matmul %0, %1, %cst {dimension_numbers = #tpu.dot_dimension_numbers<[1], [0], [0], [1], [0, 0, 1, 1], [], []>} : vector<16x32xf32>, vector<32x64xf32>, vector<16x64xf32> -> vector<16x64xf32>
    %c0_3 = arith.constant 0 : index
    %c0_4 = arith.constant 0 : index
    %3 = vector.load %arg4[%c0_3, %c0_4] : memref<1x64xf32, #tpu.memory_space<vmem>>, vector<1x64xf32>
    %4 = vector.broadcast %3 : vector<1x64xf32> to vector<16x64xf32>
    %5 = arith.addf %2, %4 : vector<16x64xf32>
    %c0_5 = arith.constant 0 : index
    %c0_6 = arith.constant 0 : index
    %6 = vector.load %arg5[%c0_5, %c0_6] : memref<16x64xf32, #tpu.memory_space<vmem>>, vector<16x64xf32>
    tpu.vector_store %arg5[%c0_5, %c0_6], %5 {strides = array<i32>} : memref<16x64xf32, #tpu.memory_space<vmem>>, vector<16x64xf32>,
    return
  }
  func.func @transform_0(%arg0: i32, %arg1: i32) -> (i32, i32) {
    %c0_i32 = arith.constant 0 : i32
    %c0_i32_0 = arith.constant 0 : i32
    return %arg0, %c0_i32 : i32, i32
  }
  func.func @transform_1(%arg0: i32, %arg1: i32) -> (i32, i32) {
    %c0_i32 = arith.constant 0 : i32
    %c0_i32_0 = arith.constant 0 : i32
    return %c0_i32, %arg1 : i32, i32
  }
  func.func @transform_2(%arg0: i32, %arg1: i32) -> (i32, i32) {
    %c0_i32 = arith.constant 0 : i32
    %c0_i32_0 = arith.constant 0 : i32
    return %c0_i32, %arg1 : i32, i32
  }
  func.func @transform_3(%arg0: i32, %arg1: i32) -> (i32, i32) {
    %c0_i32 = arith.constant 0 : i32
    return %arg0, %arg1 : i32, i32
  }
}

module attributes {stable_mosaic.version = 11 : i64} {
  func.func @_nsp_kernel(%arg0: i32, %arg1: memref<2x32xf32, #tpu.memory_space<vmem>>, %arg2: memref<32x2xf32, #tpu.memory_space<vmem>>, %arg3: memref<1x2xf32, #tpu.memory_space<vmem>>, %arg4: memref<2x2xf32, #tpu.memory_space<vmem>>) attributes {dimension_semantics = [#tpu.dimension_semantics<arbitrary>], iteration_bounds = array<i64: 1>, scalar_prefetch = 0 : i64, scratch_operands = 0 : i64, tpu.core_type = #tpu.core_type<tc>, window_params = [{pipeline_mode = #tpu.pipeline_mode<synchronous>, transform_indices = @transform_0, window_bounds = array<i64: 2, 32>}, {pipeline_mode = #tpu.pipeline_mode<synchronous>, transform_indices = @transform_1, window_bounds = array<i64: 32, 2>}, {pipeline_mode = #tpu.pipeline_mode<synchronous>, transform_indices = @transform_2, window_bounds = array<i64: 1, 2>}, {pipeline_mode = #tpu.pipeline_mode<synchronous>, transform_indices = @transform_3, window_bounds = array<i64: 2, 2>}]} {
    %c0 = arith.constant 0 : index
    %c0_0 = arith.constant 0 : index
    %0 = vector.load %arg1[%c0, %c0_0] : memref<2x32xf32, #tpu.memory_space<vmem>>, vector<2x32xf32>
    %c0_1 = arith.constant 0 : index
    %c0_2 = arith.constant 0 : index
    %1 = vector.load %arg2[%c0_1, %c0_2] : memref<32x2xf32, #tpu.memory_space<vmem>>, vector<32x2xf32>
    %cst = arith.constant dense<0.000000e+00> : vector<2x2xf32>
    %2 = tpu.matmul %0, %1, %cst {dimension_numbers = #tpu.dot_dimension_numbers<[1], [0], [0], [1], [0, 0, 1, 1], [], []>} : vector<2x32xf32>, vector<32x2xf32>, vector<2x2xf32> -> vector<2x2xf32>
    %c0_3 = arith.constant 0 : index
    %c0_4 = arith.constant 0 : index
    %3 = vector.load %arg3[%c0_3, %c0_4] : memref<1x2xf32, #tpu.memory_space<vmem>>, vector<1x2xf32>
    %4 = vector.broadcast %3 : vector<1x2xf32> to vector<2x2xf32>
    %5 = arith.addf %2, %4 : vector<2x2xf32>
    %c0_5 = arith.constant 0 : index
    %c0_6 = arith.constant 0 : index
    %6 = vector.load %arg4[%c0_5, %c0_6] : memref<2x2xf32, #tpu.memory_space<vmem>>, vector<2x2xf32>
    tpu.vector_store %arg4[%c0_5, %c0_6], %5 {strides = array<i32>} : memref<2x2xf32, #tpu.memory_space<vmem>>, vector<2x2xf32>,
    return
  }
  func.func @transform_0(%arg0: i32) -> (i32, i32) {
    %c0_i32 = arith.constant 0 : i32
    %c0_i32_0 = arith.constant 0 : i32
    %c0_i32_1 = arith.constant 0 : i32
    return %c0_i32, %c0_i32_0 : i32, i32
  }
  func.func @transform_1(%arg0: i32) -> (i32, i32) {
    %c0_i32 = arith.constant 0 : i32
    %c0_i32_0 = arith.constant 0 : i32
    %c0_i32_1 = arith.constant 0 : i32
    return %c0_i32, %c0_i32_0 : i32, i32
  }
  func.func @transform_2(%arg0: i32) -> (i32, i32) {
    %c0_i32 = arith.constant 0 : i32
    %c0_i32_0 = arith.constant 0 : i32
    %c0_i32_1 = arith.constant 0 : i32
    return %c0_i32, %c0_i32_0 : i32, i32
  }
  func.func @transform_3(%arg0: i32) -> (i32, i32) {
    %c0_i32 = arith.constant 0 : i32
    %c0_i32_0 = arith.constant 0 : i32
    %c0_i32_1 = arith.constant 0 : i32
    return %c0_i32, %c0_i32_0 : i32, i32
  }
}

</mosaic_0001>

<llo_original>
// kernel: bert_forward.6
$region0: #{bert_forward.6}
  #allocation0 [shape = 'u32[]', space=smem, size = 0x4, offset = 0x4, fixed_abs, tag = 'smem constant byte address 0x4 - core index']
  #allocation1 [shape = 'u32[144,128]{1,0:T(1,128)}', space=vmem, size = 0x12000, scoped, tag = 'internal scratch']
  %s0 = inlined_call_operand.vmem [shape: f32[16,32], index: 0, kind: input, shape index: {}]
  %s1 = inlined_call_operand.vmem [shape: f32[32,64], index: 1, kind: input, shape index: {}]
  %s2 = inlined_call_operand.vmem [shape: f32[1,64], index: 2, kind: input, shape index: {}]
  %s3 = inlined_call_operand.hbm [shape: f32[16,64], index: 3, kind: output, shape index: {}]
  %s4 = sld [smem:[#allocation0]]
  $region22: #{bert_forward.6} parent=0
    _
  %s6 = ssub.s32 1, %s4
  %s7 = scalar_select 0, %s6, %s4
  $region1: #{bert_forward.6} parent=0
    #allocation2 [shape = 'u8[8192]{0}', space=vmem, size = 0x2000, scoped, tag = 'output window, operand 0, single buffered']
    #allocation3 [shape = 's32[1]{0}', space=sflag, size = 0x4, scoped, tag = 'scoped memory for bert_forward.6']
    %8 = vsyncpa [#allocation3], 0
    // Predicated region
    $region2: #{bert_forward.6} parent=1 // pred_check
      _
    $region3: #{bert_forward.6} parent=1 // pred_check_branch
      %10 = sbr.rel (0) target = $region5
    $region4: #{bert_forward.6} parent=1 // pred_region
      _
    $region5: #{bert_forward.6} parent=1 // pred_fallthru
      _
    // Predicated region
    $region6: #{bert_forward.6} parent=1 // pred_check
      _
    $region7: #{bert_forward.6} parent=1 // pred_check_branch
      %12 = sbr.rel (0) target = $region9
    $region8: #{bert_forward.6} parent=1 // pred_region
      _
    $region9: #{bert_forward.6} parent=1 // pred_fallthru
      _
    // Predicated region
    $region10: #{bert_forward.6} parent=1 // pred_check
      _
    $region11: #{bert_forward.6} parent=1 // pred_check_branch
      %14 = sbr.rel (0) target = $region13
    $region12: #{bert_forward.6} parent=1 // pred_region
      _
    $region13: #{bert_forward.6} parent=1 // pred_fallthru
      _
    %v15 = vld [vmem:[%s0] sm:$0xff]
    %v16 = vld [vmem:[%s0 + $0x8] sm:$0xff]
    %v17 = vld [vmem:[%s1] sm:$0xff]
    %v18 = vld [vmem:[%s1 + $0x8] sm:$0xff]
    %v19 = vld [vmem:[%s1 + $0x10] sm:$0xff]
    %v20 = vld [vmem:[%s1 + $0x18] sm:$0xff]
    %v21 = vld [vmem:[%s2] sm:$0x1]
    %v23 = vlaneseq
    %v24 = vshrl.u32 %v23, 7
    %v25 = vsub.s32 0, %v24
    %v26 = vrot.slane %v21, %v25
    %vm28 = vcmask 261120
    %v30 = vsel %vm28, %v15, 0
    %v33 = vsel %vm28, %v16, 0
    %35 = vmatprep.subr.mxu0 0.0
    %36 = vmatpush1.msra.mxu0 0.0
    %37 = vmatprep.subr.mxu0 0.0
    %38 = vmatpush1.msra.mxu0 0.0
    %39 = vmatprep.subr.mxu0 0.0
    %40 = vmatpush1.msra.mxu0 0.0
    %41 = vmatprep.subr.mxu0 0.0
    %42 = vmatpush1.msra.mxu0 0.0
    %43 = vmatprep.subr.mxu0 0.0
    %44 = vmatpush1.msra.mxu0 0.0
    %45 = vmatprep.subr.mxu0 0.0
    %46 = vmatpush1.msra.mxu0 0.0
    %47 = vmatprep.subr.mxu0 0.0
    %48 = vmatpush1.msra.mxu0 0.0
    %49 = vmatprep.subr.mxu0 0.0
    %50 = vmatpush1.msra.mxu0 0.0
    %51 = vmatprep.subr.mxu0 0.0
    %52 = vmatpush1.msra.mxu0 0.0
    %53 = vmatprep.subr.mxu0 0.0
    %54 = vmatpush1.msra.mxu0 0.0
    %55 = vmatprep.subr.mxu0 0.0
    %56 = vmatpush1.msra.mxu0 0.0
    %57 = vmatprep.subr.mxu0 0.0
    %58 = vmatpush1.msra.mxu0 0.0
    %59 = vmatprep.subr.mxu0 0.0
    %60 = vmatpush1.msra.mxu0 %v20
    %61 = vmatprep.subr.mxu0 0.0
    %62 = vmatpush1.msra.mxu0 %v19
    %63 = vmatprep.subr.mxu0 0.0
    %64 = vmatpush1.msra.mxu0 %v18
    %65 = vmatprep.subr.mxu0 0.0
    %66 = vmatpush1.msra.mxu0 %v17
    %67 = vmatprep.subr.mxu0 0.0
    %68 = vmatpush2.msra.mxu0 0.0
    %69 = vmatprep.subr.mxu0 0.0
    %70 = vmatpush2.msra.mxu0 0.0
    %71 = vmatprep.subr.mxu0 0.0
    %72 = vmatpush2.msra.mxu0 0.0
    %73 = vmatprep.subr.mxu0 0.0
    %74 = vmatpush2.msra.mxu0 0.0
    %75 = vmatprep.subr.mxu0 0.0
    %76 = vmatpush2.msra.mxu0 0.0
    %77 = vmatprep.subr.mxu0 0.0
    %78 = vmatpush2.msra.mxu0 0.0
    %79 = vmatprep.subr.mxu0 0.0
    %80 = vmatpush2.msra.mxu0 0.0
    %81 = vmatprep.subr.mxu0 0.0
    %82 = vmatpush2.msra.mxu0 0.0
    %83 = vmatprep.subr.mxu0 0.0
    %84 = vmatpush2.msra.mxu0 0.0
    %85 = vmatprep.subr.mxu0 0.0
    %86 = vmatpush2.msra.mxu0 0.0
    %87 = vmatprep.subr.mxu0 0.0
    %88 = vmatpush2.msra.mxu0 0.0
    %89 = vmatprep.subr.mxu0 0.0
    %90 = vmatpush2.msra.mxu0 0.0
    %91 = vmatprep.subr.mxu0 0.0
    %92 = vmatpush2.msra.mxu0 0.0
    %93 = vmatprep.subr.mxu0 0.0
    %94 = vmatpush2.msra.mxu0 0.0
    %95 = vmatprep.subr.mxu0 0.0
    %96 = vmatpush2.msra.mxu0 0.0
    %97 = vmatprep.subr.mxu0 0.0
    %98 = vmatpush2.msra.mxu0 0.0
    %99 = vmatprep.mubr.f32.mxu0 0.0
    %100 = vmatmul.mubr.f32.gmra.mxu0 %v30
    %v101 = vpop.f32.mrf.mxu0
    %v102 = vadd.f32 %v26, %v101
    %v103 = vpop.f32.mrf.mxu0
    %104 = vmatprep.mubr.f32.mxu0 0.0
    %105 = vmatmul.mubr.f32.gmra.mxu0 %v33
    %v106 = vpop.f32.mrf.mxu0
    %v107 = vadd.f32 %v26, %v106
    %v108 = vpop.f32.mrf.mxu0
    %109 = vdwg.mxu0
    %vm110 = vcmask 523264
    %111 = vst.msk [vmem:[#allocation2] sm:$0xff] %vm110, %v102
    %112 = vst.msk [vmem:[#allocation2 + $0x8] sm:$0xff] %vm110, %v107
    // Predicated region
    $region14: #{bert_forward.6} parent=1 // pred_check
      _
    $region15: #{bert_forward.6} parent=1 // pred_check_branch
      %114 = sbr.rel (0) target = $region17
    $region16: #{bert_forward.6} parent=1 // pred_region
      %s116 = ssub.s32 256, 256
      %117 = vsyncadd [#allocation3], %s116
      %s118 = sshll.u32 [#allocation2], 4
      %s119 = int_to_ptr.vmem [resolvable:$true] %s118
      %124 = dma.vmem_to_hbm [thread:$0]  %s119, 256, %s3, [#allocation3], 128, 128, 8
    $region17: #{bert_forward.6} parent=1 // pred_fallthru
      _
    // Predicated region
    $region18: #{bert_forward.6} parent=1 // pred_check
      _
    $region19: #{bert_forward.6} parent=1 // pred_check_branch
      %126 = sbr.rel (0) target = $region21
    $region20: #{bert_forward.6} parent=1 // pred_region
      %127 = dma.done [#allocation3], 256
    $region21: #{bert_forward.6} parent=1 // pred_fallthru
      _
    %128 = vsyncpa [#allocation3], 1

// kernel: bert_forward.7
$region0: #{bert_forward.7}
  #allocation0 [shape = 'u32[]', space=smem, size = 0x4, offset = 0x4, fixed_abs, tag = 'smem constant byte address 0x4 - core index']
  #allocation1 [shape = 'u32[144,128]{1,0:T(1,128)}', space=vmem, size = 0x12000, scoped, tag = 'internal scratch']
  %s0 = inlined_call_operand.vmem [shape: f32[2,32], index: 0, kind: input, shape index: {}]
  %s1 = inlined_call_operand.vmem [shape: f32[32,2], index: 1, kind: input, shape index: {}]
  %s2 = inlined_call_operand.vmem [shape: f32[1,2], index: 2, kind: input, shape index: {}]
  %s3 = inlined_call_operand.hbm [shape: f32[2,2], index: 3, kind: output, shape index: {}]
  %s4 = sld [smem:[#allocation0]]
  $region22: #{bert_forward.7} parent=0
    _
  %s6 = ssub.s32 1, %s4
  %s7 = scalar_select 0, %s6, %s4
  $region1: #{bert_forward.7} parent=0
    #allocation2 [shape = 'u8[1024]{0}', space=vmem, size = 0x400, scoped, tag = 'output window, operand 0, single buffered']
    #allocation3 [shape = 's32[1]{0}', space=sflag, size = 0x4, scoped, tag = 'scoped memory for bert_forward.7']
    %8 = vsyncpa [#allocation3], 0
    // Predicated region
    $region2: #{bert_forward.7} parent=1 // pred_check
      _
    $region3: #{bert_forward.7} parent=1 // pred_check_branch
      %10 = sbr.rel (0) target = $region5
    $region4: #{bert_forward.7} parent=1 // pred_region
      _
    $region5: #{bert_forward.7} parent=1 // pred_fallthru
      _
    // Predicated region
    $region6: #{bert_forward.7} parent=1 // pred_check
      _
    $region7: #{bert_forward.7} parent=1 // pred_check_branch
      %12 = sbr.rel (0) target = $region9
    $region8: #{bert_forward.7} parent=1 // pred_region
      _
    $region9: #{bert_forward.7} parent=1 // pred_fallthru
      _
    // Predicated region
    $region10: #{bert_forward.7} parent=1 // pred_check
      _
    $region11: #{bert_forward.7} parent=1 // pred_check_branch
      %14 = sbr.rel (0) target = $region13
    $region12: #{bert_forward.7} parent=1 // pred_region
      _
    $region13: #{bert_forward.7} parent=1 // pred_fallthru
      _
    %v15 = vld [vmem:[%s0] sm:$0x3]
    %v16 = vld [vmem:[%s1] sm:$0xff]
    %v17 = vld [vmem:[%s1 + $0x8] sm:$0xff]
    %v18 = vld [vmem:[%s1 + $0x10] sm:$0xff]
    %v19 = vld [vmem:[%s1 + $0x18] sm:$0xff]
    %v20 = vld [vmem:[%s2] sm:$0x1]
    %v22 = vlaneseq
    %v23 = vshrl.u32 %v22, 7
    %v24 = vsub.s32 0, %v23
    %v25 = vrot.slane %v20, %v24
    %vm27 = vcmask 261120
    %v29 = vsel %vm27, %v15, 0
    %31 = vmatprep.subr.mxu0 0.0
    %32 = vmatpush1.msra.mxu0 0.0
    %33 = vmatprep.subr.mxu0 0.0
    %34 = vmatpush1.msra.mxu0 0.0
    %35 = vmatprep.subr.mxu0 0.0
    %36 = vmatpush1.msra.mxu0 0.0
    %37 = vmatprep.subr.mxu0 0.0
    %38 = vmatpush1.msra.mxu0 0.0
    %39 = vmatprep.subr.mxu0 0.0
    %40 = vmatpush1.msra.mxu0 0.0
    %41 = vmatprep.subr.mxu0 0.0
    %42 = vmatpush1.msra.mxu0 0.0
    %43 = vmatprep.subr.mxu0 0.0
    %44 = vmatpush1.msra.mxu0 0.0
    %45 = vmatprep.subr.mxu0 0.0
    %46 = vmatpush1.msra.mxu0 0.0
    %47 = vmatprep.subr.mxu0 0.0
    %48 = vmatpush1.msra.mxu0 0.0
    %49 = vmatprep.subr.mxu0 0.0
    %50 = vmatpush1.msra.mxu0 0.0
    %51 = vmatprep.subr.mxu0 0.0
    %52 = vmatpush1.msra.mxu0 0.0
    %53 = vmatprep.subr.mxu0 0.0
    %54 = vmatpush1.msra.mxu0 0.0
    %55 = vmatprep.subr.mxu0 0.0
    %56 = vmatpush1.msra.mxu0 %v19
    %57 = vmatprep.subr.mxu0 0.0
    %58 = vmatpush1.msra.mxu0 %v18
    %59 = vmatprep.subr.mxu0 0.0
    %60 = vmatpush1.msra.mxu0 %v17
    %61 = vmatprep.subr.mxu0 0.0
    %62 = vmatpush1.msra.mxu0 %v16
    %63 = vmatprep.subr.mxu0 0.0
    %64 = vmatpush2.msra.mxu0 0.0
    %65 = vmatprep.subr.mxu0 0.0
    %66 = vmatpush2.msra.mxu0 0.0
    %67 = vmatprep.subr.mxu0 0.0
    %68 = vmatpush2.msra.mxu0 0.0
    %69 = vmatprep.subr.mxu0 0.0
    %70 = vmatpush2.msra.mxu0 0.0
    %71 = vmatprep.subr.mxu0 0.0
    %72 = vmatpush2.msra.mxu0 0.0
    %73 = vmatprep.subr.mxu0 0.0
    %74 = vmatpush2.msra.mxu0 0.0
    %75 = vmatprep.subr.mxu0 0.0
    %76 = vmatpush2.msra.mxu0 0.0
    %77 = vmatprep.subr.mxu0 0.0
    %78 = vmatpush2.msra.mxu0 0.0
    %79 = vmatprep.subr.mxu0 0.0
    %80 = vmatpush2.msra.mxu0 0.0
    %81 = vmatprep.subr.mxu0 0.0
    %82 = vmatpush2.msra.mxu0 0.0
    %83 = vmatprep.subr.mxu0 0.0
    %84 = vmatpush2.msra.mxu0 0.0
    %85 = vmatprep.subr.mxu0 0.0
    %86 = vmatpush2.msra.mxu0 0.0
    %87 = vmatprep.subr.mxu0 0.0
    %88 = vmatpush2.msra.mxu0 0.0
    %89 = vmatprep.subr.mxu0 0.0
    %90 = vmatpush2.msra.mxu0 0.0
    %91 = vmatprep.subr.mxu0 0.0
    %92 = vmatpush2.msra.mxu0 0.0
    %93 = vmatprep.subr.mxu0 0.0
    %94 = vmatpush2.msra.mxu0 0.0
    %95 = vmatprep.mubr.f32.mxu0 0.0
    %96 = vmatmul.mubr.f32.gmra.mxu0 %v29
    %v97 = vpop.f32.mrf.mxu0
    %v98 = vadd.f32 %v25, %v97
    %v99 = vpop.f32.mrf.mxu0
    %100 = vdwg.mxu0
    %vm101 = vcmask 9216
    %102 = vst.msk [vmem:[#allocation2] sm:$0x3] %vm101, %v98
    // Predicated region
    $region14: #{bert_forward.7} parent=1 // pred_check
      _
    $region15: #{bert_forward.7} parent=1 // pred_check_branch
      %104 = sbr.rel (0) target = $region17
    $region16: #{bert_forward.7} parent=1 // pred_region
      %s106 = ssub.s32 32, 32
      %107 = vsyncadd [#allocation3], %s106
      %s109 = sshll.u32 [#allocation2], 4
      %s110 = int_to_ptr.vmem [resolvable:$true] %s109
      %112 = dma.vmem_to_hbm [thread:$0]  %s110, 32, %s3, [#allocation3]
    $region17: #{bert_forward.7} parent=1 // pred_fallthru
      _
    // Predicated region
    $region18: #{bert_forward.7} parent=1 // pred_check
      _
    $region19: #{bert_forward.7} parent=1 // pred_check_branch
      %114 = sbr.rel (0) target = $region21
    $region20: #{bert_forward.7} parent=1 // pred_region
      %115 = dma.done [#allocation3], 32
    $region21: #{bert_forward.7} parent=1 // pred_fallthru
      _
    %116 = vsyncpa [#allocation3], 1

// kernel: bert_forward.4
$region0: #{bert_forward.4}
  #allocation0 [shape = 'u32[]', space=smem, size = 0x4, offset = 0x4, fixed_abs, tag = 'smem constant byte address 0x4 - core index']
  #allocation1 [shape = 'u32[144,128]{1,0:T(1,128)}', space=vmem, size = 0x12000, scoped, tag = 'internal scratch']
  %s0 = inlined_call_operand.vmem [shape: f32[2,8,32], index: 0, kind: input, shape index: {}]
  %s1 = inlined_call_operand.vmem [shape: f32[2,1,8], index: 1, kind: input, shape index: {}]
  %s2 = inlined_call_operand.vmem [shape: f32[1,32], index: 2, kind: input, shape index: {}]
  %s3 = inlined_call_operand.vmem [shape: f32[1,32], index: 3, kind: input, shape index: {}]
  %s4 = inlined_call_operand.vmem [shape: f32[32,32], index: 4, kind: input, shape index: {}]
  %s5 = inlined_call_operand.vmem [shape: f32[1,32], index: 5, kind: input, shape index: {}]
  %s6 = inlined_call_operand.vmem [shape: f32[32,32], index: 6, kind: input, shape index: {}]
  %s7 = inlined_call_operand.vmem [shape: f32[1,32], index: 7, kind: input, shape index: {}]
  %s8 = inlined_call_operand.vmem [shape: f32[32,32], index: 8, kind: input, shape index: {}]
  %s9 = inlined_call_operand.vmem [shape: f32[1,32], index: 9, kind: input, shape index: {}]
  %s10 = inlined_call_operand.vmem [shape: f32[1,32], index: 10, kind: input, shape index: {}]
  %s11 = inlined_call_operand.vmem [shape: f32[1,32], index: 11, kind: input, shape index: {}]
  %s12 = inlined_call_operand.vmem [shape: f32[32,128], index: 12, kind: input, shape index: {}]
  %s13 = inlined_call_operand.vmem [shape: f32[1,128], index: 13, kind: input, shape index: {}]
  %s14 = inlined_call_operand.vmem [shape: f32[128,32], index: 14, kind: input, shape index: {}]
  %s15 = inlined_call_operand.vmem [shape: f32[1,32], index: 15, kind: input, shape index: {}]
  %s16 = inlined_call_operand.vmem [shape: f32[2,8,32], index: 16, kind: output, shape index: {}]
  %s17 = sld [smem:[#allocation0]]
  $region97: #{bert_forward.4} parent=0
    _
  %s19 = ssub.s32 1, %s17
  %s20 = scalar_select 0, %s19, %s17
  loop: start=0, step=1, limit=4
  $region2: #{bert_forward.4} parent=0 // loop_pre_header
    _
  $region3: #{bert_forward.4} parent=0 // loop_header
    %s22 = sphi 0, %s26
    %p23 = scmp.ge.s32.totalorder %s22, 4
    %s32 = sphi 0, %s34
    %s35 = sphi 0, %s32
    %s36 = sphi 0, %s35
    %s52 = sphi 0, %s36
    %s58 = sphi 0, %s60
    %s61 = sphi 0, %s58
    %s62 = sphi 0, %s61
    %s78 = sphi 0, %s62
    %s82 = sphi 0, %s82
    %s84 = sphi 0, %s82
    %s85 = sphi 0, %s84
    %s99 = sphi 0, %s85
    %s103 = sphi 0, %s103
    %s105 = sphi 0, %s103
    %s106 = sphi 0, %s105
    %s120 = sphi 0, %s106
    %s124 = sphi 0, %s124
    %s126 = sphi 0, %s124
    %s127 = sphi 0, %s126
    %s141 = sphi 0, %s127
    %s145 = sphi 0, %s145
    %s147 = sphi 0, %s145
    %s148 = sphi 0, %s147
    %s162 = sphi 0, %s148
    %s166 = sphi 0, %s166
    %s168 = sphi 0, %s166
    %s169 = sphi 0, %s168
    %s183 = sphi 0, %s169
    %s187 = sphi 0, %s187
    %s189 = sphi 0, %s187
    %s190 = sphi 0, %s189
    %s204 = sphi 0, %s190
    %s208 = sphi 0, %s208
    %s210 = sphi 0, %s208
    %s211 = sphi 0, %s210
    %s225 = sphi 0, %s211
    %s229 = sphi 0, %s229
    %s231 = sphi 0, %s229
    %s232 = sphi 0, %s231
    %s246 = sphi 0, %s232
    %s250 = sphi 0, %s250
    %s252 = sphi 0, %s250
    %s253 = sphi 0, %s252
    %s267 = sphi 0, %s253
    %s271 = sphi 0, %s271
    %s273 = sphi 0, %s271
    %s274 = sphi 0, %s273
    %s288 = sphi 0, %s274
    %s292 = sphi 0, %s292
    %s294 = sphi 0, %s292
    %s295 = sphi 0, %s294
    %s309 = sphi 0, %s295
    %s313 = sphi 0, %s313
    %s315 = sphi 0, %s313
    %s316 = sphi 0, %s315
    %s330 = sphi 0, %s316
    %s334 = sphi 0, %s334
    %s336 = sphi 0, %s334
    %s337 = sphi 0, %s336
    %s351 = sphi 0, %s337
    %s355 = sphi 0, %s355
    %s357 = sphi 0, %s355
    %s358 = sphi 0, %s357
    %s372 = sphi 0, %s358
    %s378 = sphi 0, %s380
    %s381 = sphi 0, %s378
    %s382 = sphi 0, %s381
    %s398 = sphi 0, %s382
  $region4: #{bert_forward.4} parent=0 // loop_header_branch
    %25 = sbr.rel (%p23) target = $region8
  $region5: #{bert_forward.4} parent=0 // loop_body
    %s27 = ssub.s32 %s22, 1
    %s28 = ssub.s32 %s22, 2
    %s29 = sadd.s32 %s22, 1
    %s30 = ssub.s32 %s22, %s29
    %p31 = scmp.eq.s32.totalorder %s30, 0
    %s33 = sadd.s32 %s32, 1
    %s34 = scalar_select %p31, %s32, %s33
    %p37 = pneg %p31
    %p38 = scmp.eq.s32.totalorder %s22, 1
    %p39 = por %p37, %p38
    %p40 = scmp.ne.s32.totalorder %s32, %s35
    %p41 = scmp.eq.s32.totalorder %s22, 0
    %p42 = por %p40, %p41
    %p43 = scmp.ne.s32.totalorder %s32, %s35
    %p44 = scmp.eq.s32.totalorder %s27, 1
    %p45 = por %p43, %p44
    %p46 = scmp.ne.s32.totalorder %s35, %s36
    %p47 = scmp.eq.s32.totalorder %s27, 0
    %p48 = por %p46, %p47
    %p49 = scmp.ne.s32.totalorder %s35, %s36
    %p50 = scmp.eq.s32.totalorder %s28, 1
    %p51 = por %p49, %p50
    %p53 = scmp.ne.s32.totalorder %s36, %s52
    %p54 = scmp.eq.s32.totalorder %s28, 0
    %p55 = por %p53, %p54
    %s56 = ssub.s32 %s22, %s29
    %p57 = scmp.eq.s32.totalorder %s56, 0
    %s59 = sadd.s32 %s58, 1
    %s60 = scalar_select %p57, %s58, %s59
    %p63 = pneg %p57
    %p64 = scmp.eq.s32.totalorder %s22, 1
    %p65 = por %p63, %p64
    %p66 = scmp.ne.s32.totalorder %s58, %s61
    %p67 = scmp.eq.s32.totalorder %s22, 0
    %p68 = por %p66, %p67
    %p69 = scmp.ne.s32.totalorder %s58, %s61
    %p70 = scmp.eq.s32.totalorder %s27, 1
    %p71 = por %p69, %p70
    %p72 = scmp.ne.s32.totalorder %s61, %s62
    %p73 = scmp.eq.s32.totalorder %s27, 0
    %p74 = por %p72, %p73
    %p75 = scmp.ne.s32.totalorder %s61, %s62
    %p76 = scmp.eq.s32.totalorder %s28, 1
    %p77 = por %p75, %p76
    %p79 = scmp.ne.s32.totalorder %s62, %s78
    %p80 = scmp.eq.s32.totalorder %s28, 0
    %p81 = por %p79, %p80
    %s83 = sadd.s32 %s82, 1
    %p86 = scmp.eq.s32.totalorder %s22, 1
    %p87 = scmp.ne.s32.totalorder %s82, %s84
    %p88 = scmp.eq.s32.totalorder %s22, 0
    %p89 = por %p87, %p88
    %p90 = scmp.ne.s32.totalorder %s82, %s84
    %p91 = scmp.eq.s32.totalorder %s27, 1
    %p92 = por %p90, %p91
    %p93 = scmp.ne.s32.totalorder %s84, %s85
    %p94 = scmp.eq.s32.totalorder %s27, 0
    %p95 = por %p93, %p94
    %p96 = scmp.ne.s32.totalorder %s84, %s85
    %p97 = scmp.eq.s32.totalorder %s28, 1
    %p98 = por %p96, %p97
    %p100 = scmp.ne.s32.totalorder %s85, %s99
    %p101 = scmp.eq.s32.totalorder %s28, 0
    %p102 = por %p100, %p101
    %s104 = sadd.s32 %s103, 1
    %p107 = scmp.eq.s32.totalorder %s22, 1
    %p108 = scmp.ne.s32.totalorder %s103, %s105
    %p109 = scmp.eq.s32.totalorder %s22, 0
    %p110 = por %p108, %p109
    %p111 = scmp.ne.s32.totalorder %s103, %s105
    %p112 = scmp.eq.s32.totalorder %s27, 1
    %p113 = por %p111, %p112
    %p114 = scmp.ne.s32.totalorder %s105, %s106
    %p115 = scmp.eq.s32.totalorder %s27, 0
    %p116 = por %p114, %p115
    %p117 = scmp.ne.s32.totalorder %s105, %s106
    %p118 = scmp.eq.s32.totalorder %s28, 1
    %p119 = por %p117, %p118
    %p121 = scmp.ne.s32.totalorder %s106, %s120
    %p122 = scmp.eq.s32.totalorder %s28, 0
    %p123 = por %p121, %p122
    %s125 = sadd.s32 %s124, 1
    %p128 = scmp.eq.s32.totalorder %s22, 1
    %p129 = scmp.ne.s32.totalorder %s124, %s126
    %p130 = scmp.eq.s32.totalorder %s22, 0
    %p131 = por %p129, %p130
    %p132 = scmp.ne.s32.totalorder %s124, %s126
    %p133 = scmp.eq.s32.totalorder %s27, 1
    %p134 = por %p132, %p133
    %p135 = scmp.ne.s32.totalorder %s126, %s127
    %p136 = scmp.eq.s32.totalorder %s27, 0
    %p137 = por %p135, %p136
    %p138 = scmp.ne.s32.totalorder %s126, %s127
    %p139 = scmp.eq.s32.totalorder %s28, 1
    %p140 = por %p138, %p139
    %p142 = scmp.ne.s32.totalorder %s127, %s141
    %p143 = scmp.eq.s32.totalorder %s28, 0
    %p144 = por %p142, %p143
    %s146 = sadd.s32 %s145, 1
    %p149 = scmp.eq.s32.totalorder %s22, 1
    %p150 = scmp.ne.s32.totalorder %s145, %s147
    %p151 = scmp.eq.s32.totalorder %s22, 0
    %p152 = por %p150, %p151
    %p153 = scmp.ne.s32.totalorder %s145, %s147
    %p154 = scmp.eq.s32.totalorder %s27, 1
    %p155 = por %p153, %p154
    %p156 = scmp.ne.s32.totalorder %s147, %s148
    %p157 = scmp.eq.s32.totalorder %s27, 0
    %p158 = por %p156, %p157
    %p159 = scmp.ne.s32.totalorder %s147, %s148
    %p160 = scmp.eq.s32.totalorder %s28, 1
    %p161 = por %p159, %p160
    %p163 = scmp.ne.s32.totalorder %s148, %s162
    %p164 = scmp.eq.s32.totalorder %s28, 0
    %p165 = por %p163, %p164
    %s167 = sadd.s32 %s166, 1
    %p170 = scmp.eq.s32.totalorder %s22, 1
    %p171 = scmp.ne.s32.totalorder %s166, %s168
    %p172 = scmp.eq.s32.totalorder %s22, 0
    %p173 = por %p171, %p172
    %p174 = scmp.ne.s32.totalorder %s166, %s168
    %p175 = scmp.eq.s32.totalorder %s27, 1
    %p176 = por %p174, %p175
    %p177 = scmp.ne.s32.totalorder %s168, %s169
    %p178 = scmp.eq.s32.totalorder %s27, 0
    %p179 = por %p177, %p178
    %p180 = scmp.ne.s32.totalorder %s168, %s169
    %p181 = scmp.eq.s32.totalorder %s28, 1
    %p182 = por %p180, %p181
    %p184 = scmp.ne.s32.totalorder %s169, %s183
    %p185 = scmp.eq.s32.totalorder %s28, 0
    %p186 = por %p184, %p185
    %s188 = sadd.s32 %s187, 1
    %p191 = scmp.eq.s32.totalorder %s22, 1
    %p192 = scmp.ne.s32.totalorder %s187, %s189
    %p193 = scmp.eq.s32.totalorder %s22, 0
    %p194 = por %p192, %p193
    %p195 = scmp.ne.s32.totalorder %s187, %s189
    %p196 = scmp.eq.s32.totalorder %s27, 1
    %p197 = por %p195, %p196
    %p198 = scmp.ne.s32.totalorder %s189, %s190
    %p199 = scmp.eq.s32.totalorder %s27, 0
    %p200 = por %p198, %p199
    %p201 = scmp.ne.s32.totalorder %s189, %s190
    %p202 = scmp.eq.s32.totalorder %s28, 1
    %p203 = por %p201, %p202
    %p205 = scmp.ne.s32.totalorder %s190, %s204
    %p206 = scmp.eq.s32.totalorder %s28, 0
    %p207 = por %p205, %p206
    %s209 = sadd.s32 %s208, 1
    %p212 = scmp.eq.s32.totalorder %s22, 1
    %p213 = scmp.ne.s32.totalorder %s208, %s210
    %p214 = scmp.eq.s32.totalorder %s22, 0
    %p215 = por %p213, %p214
    %p216 = scmp.ne.s32.totalorder %s208, %s210
    %p217 = scmp.eq.s32.totalorder %s27, 1
    %p218 = por %p216, %p217
    %p219 = scmp.ne.s32.totalorder %s210, %s211
    %p220 = scmp.eq.s32.totalorder %s27, 0
    %p221 = por %p219, %p220
    %p222 = scmp.ne.s32.totalorder %s210, %s211
    %p223 = scmp.eq.s32.totalorder %s28, 1
    %p224 = por %p222, %p223
    %p226 = scmp.ne.s32.totalorder %s211, %s225
    %p227 = scmp.eq.s32.totalorder %s28, 0
    %p228 = por %p226, %p227
    %s230 = sadd.s32 %s229, 1
    %p233 = scmp.eq.s32.totalorder %s22, 1
    %p234 = scmp.ne.s32.totalorder %s229, %s231
    %p235 = scmp.eq.s32.totalorder %s22, 0
    %p236 = por %p234, %p235
    %p237 = scmp.ne.s32.totalorder %s229, %s231
    %p238 = scmp.eq.s32.totalorder %s27, 1
    %p239 = por %p237, %p238
    %p240 = scmp.ne.s32.totalorder %s231, %s232
    %p241 = scmp.eq.s32.totalorder %s27, 0
    %p242 = por %p240, %p241
    %p243 = scmp.ne.s32.totalorder %s231, %s232
    %p244 = scmp.eq.s32.totalorder %s28, 1
    %p245 = por %p243, %p244
    %p247 = scmp.ne.s32.totalorder %s232, %s246
    %p248 = scmp.eq.s32.totalorder %s28, 0
    %p249 = por %p247, %p248
    %s251 = sadd.s32 %s250, 1
    %p254 = scmp.eq.s32.totalorder %s22, 1
    %p255 = scmp.ne.s32.totalorder %s250, %s252
    %p256 = scmp.eq.s32.totalorder %s22, 0
    %p257 = por %p255, %p256
    %p258 = scmp.ne.s32.totalorder %s250, %s252
    %p259 = scmp.eq.s32.totalorder %s27, 1
    %p260 = por %p258, %p259
    %p261 = scmp.ne.s32.totalorder %s252, %s253
    %p262 = scmp.eq.s32.totalorder %s27, 0
    %p263 = por %p261, %p262
    %p264 = scmp.ne.s32.totalorder %s252, %s253
    %p265 = scmp.eq.s32.totalorder %s28, 1
    %p266 = por %p264, %p265
    %p268 = scmp.ne.s32.totalorder %s253, %s267
    %p269 = scmp.eq.s32.totalorder %s28, 0
    %p270 = por %p268, %p269
    %s272 = sadd.s32 %s271, 1
    %p275 = scmp.eq.s32.totalorder %s22, 1
    %p276 = scmp.ne.s32.totalorder %s271, %s273
    %p277 = scmp.eq.s32.totalorder %s22, 0
    %p278 = por %p276, %p277
    %p279 = scmp.ne.s32.totalorder %s271, %s273
    %p280 = scmp.eq.s32.totalorder %s27, 1
    %p281 = por %p279, %p280
    %p282 = scmp.ne.s32.totalorder %s273, %s274
    %p283 = scmp.eq.s32.totalorder %s27, 0
    %p284 = por %p282, %p283
    %p285 = scmp.ne.s32.totalorder %s273, %s274
    %p286 = scmp.eq.s32.totalorder %s28, 1
    %p287 = por %p285, %p286
    %p289 = scmp.ne.s32.totalorder %s274, %s288
    %p290 = scmp.eq.s32.totalorder %s28, 0
    %p291 = por %p289, %p290
    %s293 = sadd.s32 %s292, 1
    %p296 = scmp.eq.s32.totalorder %s22, 1
    %p297 = scmp.ne.s32.totalorder %s292, %s294
    %p298 = scmp.eq.s32.totalorder %s22, 0
    %p299 = por %p297, %p298
    %p300 = scmp.ne.s32.totalorder %s292, %s294
    %p301 = scmp.eq.s32.totalorder %s27, 1
    %p302 = por %p300, %p301
    %p303 = scmp.ne.s32.totalorder %s294, %s295
    %p304 = scmp.eq.s32.totalorder %s27, 0
    %p305 = por %p303, %p304
    %p306 = scmp.ne.s32.totalorder %s294, %s295
    %p307 = scmp.eq.s32.totalorder %s28, 1
    %p308 = por %p306, %p307
    %p310 = scmp.ne.s32.totalorder %s295, %s309
    %p311 = scmp.eq.s32.totalorder %s28, 0
    %p312 = por %p310, %p311
    %s314 = sadd.s32 %s313, 1
    %p317 = scmp.eq.s32.totalorder %s22, 1
    %p318 = scmp.ne.s32.totalorder %s313, %s315
    %p319 = scmp.eq.s32.totalorder %s22, 0
    %p320 = por %p318, %p319
    %p321 = scmp.ne.s32.totalorder %s313, %s315
    %p322 = scmp.eq.s32.totalorder %s27, 1
    %p323 = por %p321, %p322
    %p324 = scmp.ne.s32.totalorder %s315, %s316
    %p325 = scmp.eq.s32.totalorder %s27, 0
    %p326 = por %p324, %p325
    %p327 = scmp.ne.s32.totalorder %s315, %s316
    %p328 = scmp.eq.s32.totalorder %s28, 1
    %p329 = por %p327, %p328
    %p331 = scmp.ne.s32.totalorder %s316, %s330
    %p332 = scmp.eq.s32.totalorder %s28, 0
    %p333 = por %p331, %p332
    %s335 = sadd.s32 %s334, 1
    %p338 = scmp.eq.s32.totalorder %s22, 1
    %p339 = scmp.ne.s32.totalorder %s334, %s336
    %p340 = scmp.eq.s32.totalorder %s22, 0
    %p341 = por %p339, %p340
    %p342 = scmp.ne.s32.totalorder %s334, %s336
    %p343 = scmp.eq.s32.totalorder %s27, 1
    %p344 = por %p342, %p343
    %p345 = scmp.ne.s32.totalorder %s336, %s337
    %p346 = scmp.eq.s32.totalorder %s27, 0
    %p347 = por %p345, %p346
    %p348 = scmp.ne.s32.totalorder %s336, %s337
    %p349 = scmp.eq.s32.totalorder %s28, 1
    %p350 = por %p348, %p349
    %p352 = scmp.ne.s32.totalorder %s337, %s351
    %p353 = scmp.eq.s32.totalorder %s28, 0
    %p354 = por %p352, %p353
    %s356 = sadd.s32 %s355, 1
    %p359 = scmp.eq.s32.totalorder %s22, 1
    %p360 = scmp.ne.s32.totalorder %s355, %s357
    %p361 = scmp.eq.s32.totalorder %s22, 0
    %p362 = por %p360, %p361
    %p363 = scmp.ne.s32.totalorder %s355, %s357
    %p364 = scmp.eq.s32.totalorder %s27, 1
    %p365 = por %p363, %p364
    %p366 = scmp.ne.s32.totalorder %s357, %s358
    %p367 = scmp.eq.s32.totalorder %s27, 0
    %p368 = por %p366, %p367
    %p369 = scmp.ne.s32.totalorder %s357, %s358
    %p370 = scmp.eq.s32.totalorder %s28, 1
    %p371 = por %p369, %p370
    %p373 = scmp.ne.s32.totalorder %s358, %s372
    %p374 = scmp.eq.s32.totalorder %s28, 0
    %p375 = por %p373, %p374
    %s376 = ssub.s32 %s22, %s29
    %p377 = scmp.eq.s32.totalorder %s376, 0
    %s379 = sadd.s32 %s378, 1
    %s380 = scalar_select %p377, %s378, %s379
    %p383 = pneg %p377
    %p384 = scmp.eq.s32.totalorder %s22, 1
    %p385 = por %p383, %p384
    %p386 = scmp.ne.s32.totalorder %s378, %s381
    %p387 = scmp.eq.s32.totalorder %s22, 0
    %p388 = por %p386, %p387
    %p389 = scmp.ne.s32.totalorder %s378, %s381
    %p390 = scmp.eq.s32.totalorder %s27, 1
    %p391 = por %p389, %p390
    %p392 = scmp.ne.s32.totalorder %s381, %s382
    %p393 = scmp.eq.s32.totalorder %s27, 0
    %p394 = por %p392, %p393
    %p395 = scmp.ne.s32.totalorder %s381, %s382
    %p396 = scmp.eq.s32.totalorder %s28, 1
    %p397 = por %p395, %p396
    %p399 = scmp.ne.s32.totalorder %s382, %s398
    %p400 = scmp.eq.s32.totalorder %s28, 0
    %p401 = por %p399, %p400
    %p402 = scmp.le.s32.totalorder 1, %s22
    %p403 = scmp.lt.s32.totalorder %s22, 3
    %p404 = pnand %p402, %p403
    %p405 = pneg %p404
    // Predicated region
    $region9: #{bert_forward.4} parent=5 // pred_check
      _
    $region10: #{bert_forward.4} parent=5 // pred_check_branch
      %407 = sbr.rel (%p404) target = $region12
    $region11: #{bert_forward.4} parent=5 // pred_region
      %s408 = ssub.s32 %s22, 1
      // Predicated region
      $region13: #{bert_forward.4} parent=11 // pred_check
        %p409 = pneg %p95
      $region14: #{bert_forward.4} parent=11 // pred_check_branch
        %411 = sbr.rel (%p409) target = $region16
      $region15: #{bert_forward.4} parent=11 // pred_region
        _
      $region16: #{bert_forward.4} parent=11 // pred_fallthru
        _
      // Predicated region
      $region17: #{bert_forward.4} parent=11 // pred_check
        %p412 = pneg %p116
      $region18: #{bert_forward.4} parent=11 // pred_check_branch
        %414 = sbr.rel (%p412) target = $region20
      $region19: #{bert_forward.4} parent=11 // pred_region
        _
      $region20: #{bert_forward.4} parent=11 // pred_fallthru
        _
      // Predicated region
      $region21: #{bert_forward.4} parent=11 // pred_check
        %p415 = pneg %p137
      $region22: #{bert_forward.4} parent=11 // pred_check_branch
        %417 = sbr.rel (%p415) target = $region24
      $region23: #{bert_forward.4} parent=11 // pred_region
        _
      $region24: #{bert_forward.4} parent=11 // pred_fallthru
        _
      // Predicated region
      $region25: #{bert_forward.4} parent=11 // pred_check
        %p418 = pneg %p158
      $region26: #{bert_forward.4} parent=11 // pred_check_branch
        %420 = sbr.rel (%p418) target = $region28
      $region27: #{bert_forward.4} parent=11 // pred_region
        _
      $region28: #{bert_forward.4} parent=11 // pred_fallthru
        _
      // Predicated region
      $region29: #{bert_forward.4} parent=11 // pred_check
        %p421 = pneg %p179
      $region30: #{bert_forward.4} parent=11 // pred_check_branch
        %423 = sbr.rel (%p421) target = $region32
      $region31: #{bert_forward.4} parent=11 // pred_region
        _
      $region32: #{bert_forward.4} parent=11 // pred_fallthru
        _
      // Predicated region
      $region33: #{bert_forward.4} parent=11 // pred_check
        %p424 = pneg %p200
      $region34: #{bert_forward.4} parent=11 // pred_check_branch
        %426 = sbr.rel (%p424) target = $region36
      $region35: #{bert_forward.4} parent=11 // pred_region
        _
      $region36: #{bert_forward.4} parent=11 // pred_fallthru
        _
      // Predicated region
      $region37: #{bert_forward.4} parent=11 // pred_check
        %p427 = pneg %p221
      $region38: #{bert_forward.4} parent=11 // pred_check_branch
        %429 = sbr.rel (%p427) target = $region40
      $region39: #{bert_forward.4} parent=11 // pred_region
        _
      $region40: #{bert_forward.4} parent=11 // pred_fallthru
        _
      // Predicated region
      $region41: #{bert_forward.4} parent=11 // pred_check
        %p430 = pneg %p242
      $region42: #{bert_forward.4} parent=11 // pred_check_branch
        %432 = sbr.rel (%p430) target = $region44
      $region43: #{bert_forward.4} parent=11 // pred_region
        _
      $region44: #{bert_forward.4} parent=11 // pred_fallthru
        _
      // Predicated region
      $region45: #{bert_forward.4} parent=11 // pred_check
        %p433 = pneg %p263
      $region46: #{bert_forward.4} parent=11 // pred_check_branch
        %435 = sbr.rel (%p433) target = $region48
      $region47: #{bert_forward.4} parent=11 // pred_region
        _
      $region48: #{bert_forward.4} parent=11 // pred_fallthru
        _
      // Predicated region
      $region49: #{bert_forward.4} parent=11 // pred_check
        %p436 = pneg %p284
      $region50: #{bert_forward.4} parent=11 // pred_check_branch
        %438 = sbr.rel (%p436) target = $region52
      $region51: #{bert_forward.4} parent=11 // pred_region
        _
      $region52: #{bert_forward.4} parent=11 // pred_fallthru
        _
      // Predicated region
      $region53: #{bert_forward.4} parent=11 // pred_check
        %p439 = pneg %p305
      $region54: #{bert_forward.4} parent=11 // pred_check_branch
        %441 = sbr.rel (%p439) target = $region56
      $region55: #{bert_forward.4} parent=11 // pred_region
        _
      $region56: #{bert_forward.4} parent=11 // pred_fallthru
        _
      // Predicated region
      $region57: #{bert_forward.4} parent=11 // pred_check
        %p442 = pneg %p326
      $region58: #{bert_forward.4} parent=11 // pred_check_branch
        %444 = sbr.rel (%p442) target = $region60
      $region59: #{bert_forward.4} parent=11 // pred_region
        _
      $region60: #{bert_forward.4} parent=11 // pred_fallthru
        _
      // Predicated region
      $region61: #{bert_forward.4} parent=11 // pred_check
        %p445 = pneg %p347
      $region62: #{bert_forward.4} parent=11 // pred_check_branch
        %447 = sbr.rel (%p445) target = $region64
      $region63: #{bert_forward.4} parent=11 // pred_region
        _
      $region64: #{bert_forward.4} parent=11 // pred_fallthru
        _
      // Predicated region
      $region65: #{bert_forward.4} parent=11 // pred_check
        %p448 = pneg %p368
      $region66: #{bert_forward.4} parent=11 // pred_check_branch
        %450 = sbr.rel (%p448) target = $region68
      $region67: #{bert_forward.4} parent=11 // pred_region
        _
      $region68: #{bert_forward.4} parent=11 // pred_fallthru
        _
    $region12: #{bert_forward.4} parent=5 // pred_fallthru
      _
    %p451 = scmp.lt.s32.totalorder %s22, 2
    // Predicated region
    $region69: #{bert_forward.4} parent=5 // pred_check
      %p452 = pneg %p451
    $region70: #{bert_forward.4} parent=5 // pred_check_branch
      %454 = sbr.rel (%p452) target = $region72
    $region71: #{bert_forward.4} parent=5 // pred_region
      // Predicated region
      $region73: #{bert_forward.4} parent=71 // pred_check
        %p455 = pneg %p42
      $region74: #{bert_forward.4} parent=71 // pred_check_branch
        %457 = sbr.rel (%p455) target = $region76
      $region75: #{bert_forward.4} parent=71 // pred_region
        %p458 = scmp.lt.s32.totalorder %s22, 1
        %s459 = scalar_select %p458, %s22, 1
        %s460 = smul.addr %s459, 8
        %s461 = scalar_lea.vmem %s0, %s460
      $region76: #{bert_forward.4} parent=71 // pred_fallthru
        _
      // Predicated region
      $region77: #{bert_forward.4} parent=71 // pred_check
        %p462 = pneg %p68
      $region78: #{bert_forward.4} parent=71 // pred_check_branch
        %464 = sbr.rel (%p462) target = $region80
      $region79: #{bert_forward.4} parent=71 // pred_region
        %p465 = scmp.lt.s32.totalorder %s22, 1
        %s466 = scalar_select %p465, %s22, 1
        %s467 = scalar_lea.vmem %s1, %s466
      $region80: #{bert_forward.4} parent=71 // pred_fallthru
        _
    $region72: #{bert_forward.4} parent=5 // pred_fallthru
      _
    %p468 = scmp.le.s32.totalorder 1, %s22
    %p469 = scmp.lt.s32.totalorder %s22, 3
    %p470 = pnand %p468, %p469
    %p471 = pneg %p470
    // Predicated region
    $region81: #{bert_forward.4} parent=5 // pred_check
      _
    $region82: #{bert_forward.4} parent=5 // pred_check_branch
      %473 = sbr.rel (%p470) target = $region84
    $region83: #{bert_forward.4} parent=5 // pred_region
      %s474 = ssub.s32 %s22, 1
      %p475 = scmp.lt.s32.totalorder %s27, 1
      %s476 = scalar_select %p475, %s27, 1
      %s477 = smul.addr %s476, 8
      %s478 = scalar_lea.vmem %s0, %s477
      %p479 = pneg %p48
      %p480 = pneg %p45
      %p481 = scmp.lt.s32.totalorder %s27, 1
      %s482 = scalar_select %p481, %s27, 1
      %s483 = scalar_lea.vmem %s1, %s482
      %p484 = pneg %p74
      %p485 = pneg %p71
      %p486 = pneg %p95
      %p487 = pneg %p92
      %p488 = pneg %p116
      %p489 = pneg %p113
      %p490 = pneg %p137
      %p491 = pneg %p134
      %p492 = pneg %p158
      %p493 = pneg %p155
      %p494 = pneg %p179
      %p495 = pneg %p176
      %p496 = pneg %p200
      %p497 = pneg %p197
      %p498 = pneg %p221
      %p499 = pneg %p218
      %p500 = pneg %p242
      %p501 = pneg %p239
      %p502 = pneg %p263
      %p503 = pneg %p260
      %p504 = pneg %p284
      %p505 = pneg %p281
      %p506 = pneg %p305
      %p507 = pneg %p302
      %p508 = pneg %p326
      %p509 = pneg %p323
      %p510 = pneg %p347
      %p511 = pneg %p344
      %p512 = pneg %p368
      %p513 = pneg %p365
      %p514 = pneg %p394
      %p515 = pneg %p391
      %p516 = scmp.lt.s32.totalorder %s27, 1
      %s517 = scalar_select %p516, %s27, 1
      %s518 = smul.addr %s517, 8
      %s519 = scalar_lea.vmem %s16, %s518
      %p520 = scmp.lt.s32.totalorder %s27, 1
      %s521 = scalar_select %p520, %s27, 1
      %s522 = smul.addr %s521, 8
      %s523 = scalar_lea.vmem %s0, %s522
      %p524 = scmp.lt.s32.totalorder %s27, 1
      %s525 = scalar_select %p524, %s27, 1
      %s526 = scalar_lea.vmem %s1, %s525
      %p527 = scmp.lt.s32.totalorder %s27, 1
      %s528 = scalar_select %p527, %s27, 1
      %s529 = smul.addr %s528, 8
      %s530 = scalar_lea.vmem %s16, %s529
      %v531 = vld [vmem:[%s523] sm:$0xff]
      %v532 = vld [vmem:[%s526] sm:$0x1]
      %vm533 = vcmask 261120
      %v534 = vsel %vm533, %v531, 0.0
      %535 = vadd.xlane.f32.xlu0 %v534
      %v536 = vpop.xlane.xlu0 %535
      %v537 = vrcp.pop 32.0
      %v538 = vmul.f32 %v536, %v537
      %v539 = vsub.f32 %v531, %v538
      %v540 = vmul.f32 %v539, %v539
      %v541 = vsel %vm533, %v540, 0.0
      %542 = vadd.xlane.f32.xlu0 %v541
      %v543 = vpop.xlane.xlu0 %542
      %v544 = vmul.f32 %v543, %v537
      %v545 = vadd.f32 %v544, 1e-05
      %v546 = vrsqrt.pop %v545
      %v547 = vmul.f32 %v539, %v546
      %v548 = vld [vmem:[%s2] sm:$0x1]
      %v550 = vlaneseq
      %v551 = vshrl.u32 %v550, 7
      %v552 = vsub.s32 0, %v551
      %v553 = vrot.slane %v548, %v552
      %v555 = vmul.f32 %v547, %v553
      %v556 = vld [vmem:[%s3] sm:$0x1]
      %v558 = vlaneseq
      %v559 = vshrl.u32 %v558, 7
      %v560 = vsub.s32 0, %v559
      %v561 = vrot.slane %v556, %v560
      %v563 = vadd.f32 %v555, %v561
      %v564 = vld [vmem:[%s4] sm:$0xff]
      %v565 = vld [vmem:[%s4 + $0x8] sm:$0xff]
      %v566 = vld [vmem:[%s4 + $0x10] sm:$0xff]
      %v567 = vld [vmem:[%s4 + $0x18] sm:$0xff]
      %v568 = vld [vmem:[%s5] sm:$0x1]
      %v570 = vlaneseq
      %v571 = vshrl.u32 %v570, 7
      %v572 = vsub.s32 0, %v571
      %v573 = vrot.slane %v568, %v572
      %v576 = vsel %vm533, %v563, 0
      %578 = vmatprep.subr.mxu0 0.0
      %579 = vmatpush1.msra.mxu0 0.0
      %580 = vmatprep.subr.mxu0 0.0
      %581 = vmatpush1.msra.mxu0 0.0
      %582 = vmatprep.subr.mxu0 0.0
      %583 = vmatpush1.msra.mxu0 0.0
      %584 = vmatprep.subr.mxu0 0.0
      %585 = vmatpush1.msra.mxu0 0.0
      %586 = vmatprep.subr.mxu0 0.0
      %587 = vmatpush1.msra.mxu0 0.0
      %588 = vmatprep.subr.mxu0 0.0
      %589 = vmatpush1.msra.mxu0 0.0
      %590 = vmatprep.subr.mxu0 0.0
      %591 = vmatpush1.msra.mxu0 0.0
      %592 = vmatprep.subr.mxu0 0.0
      %593 = vmatpush1.msra.mxu0 0.0
      %594 = vmatprep.subr.mxu0 0.0
      %595 = vmatpush1.msra.mxu0 0.0
      %596 = vmatprep.subr.mxu0 0.0
      %597 = vmatpush1.msra.mxu0 0.0
      %598 = vmatprep.subr.mxu0 0.0
      %599 = vmatpush1.msra.mxu0 0.0
      %600 = vmatprep.subr.mxu0 0.0
      %601 = vmatpush1.msra.mxu0 0.0
      %602 = vmatprep.subr.mxu0 0.0
      %603 = vmatpush1.msra.mxu0 %v567
      %604 = vmatprep.subr.mxu0 0.0
      %605 = vmatpush1.msra.mxu0 %v566
      %606 = vmatprep.subr.mxu0 0.0
      %607 = vmatpush1.msra.mxu0 %v565
      %608 = vmatprep.subr.mxu0 0.0
      %609 = vmatpush1.msra.mxu0 %v564
      %610 = vmatprep.subr.mxu0 0.0
      %611 = vmatpush2.msra.mxu0 0.0
      %612 = vmatprep.subr.mxu0 0.0
      %613 = vmatpush2.msra.mxu0 0.0
      %614 = vmatprep.subr.mxu0 0.0
      %615 = vmatpush2.msra.mxu0 0.0
      %616 = vmatprep.subr.mxu0 0.0
      %617 = vmatpush2.msra.mxu0 0.0
      %618 = vmatprep.subr.mxu0 0.0
      %619 = vmatpush2.msra.mxu0 0.0
      %620 = vmatprep.subr.mxu0 0.0
      %621 = vmatpush2.msra.mxu0 0.0
      %622 = vmatprep.subr.mxu0 0.0
      %623 = vmatpush2.msra.mxu0 0.0
      %624 = vmatprep.subr.mxu0 0.0
      %625 = vmatpush2.msra.mxu0 0.0
      %626 = vmatprep.subr.mxu0 0.0
      %627 = vmatpush2.msra.mxu0 0.0
      %628 = vmatprep.subr.mxu0 0.0
      %629 = vmatpush2.msra.mxu0 0.0
      %630 = vmatprep.subr.mxu0 0.0
      %631 = vmatpush2.msra.mxu0 0.0
      %632 = vmatprep.subr.mxu0 0.0
      %633 = vmatpush2.msra.mxu0 0.0
      %634 = vmatprep.subr.mxu0 0.0
      %635 = vmatpush2.msra.mxu0 0.0
      %636 = vmatprep.subr.mxu0 0.0
      %637 = vmatpush2.msra.mxu0 0.0
      %638 = vmatprep.subr.mxu0 0.0
      %639 = vmatpush2.msra.mxu0 0.0
      %640 = vmatprep.subr.mxu0 0.0
      %641 = vmatpush2.msra.mxu0 0.0
      %642 = vmatprep.mubr.f32.mxu0 0.0
      %643 = vmatmul.mubr.f32.gmra.mxu0 %v576
      %v644 = vpop.f32.mrf.mxu0
      %v645 = vadd.f32 %v573, %v644
      %v646 = vpop.f32.mrf.mxu0
      %647 = vdwg.mxu0
      %v648 = vld [vmem:[%s6] sm:$0xff]
      %v649 = vld [vmem:[%s6 + $0x8] sm:$0xff]
      %v650 = vld [vmem:[%s6 + $0x10] sm:$0xff]
      %v651 = vld [vmem:[%s6 + $0x18] sm:$0xff]
      %v652 = vld [vmem:[%s7] sm:$0x1]
      %v654 = vlaneseq
      %v655 = vshrl.u32 %v654, 7
      %v656 = vsub.s32 0, %v655
      %v657 = vrot.slane %v652, %v656
      %659 = vmatprep.subr.mxu0 0.0
      %660 = vmatpush1.msra.mxu0 0.0
      %661 = vmatprep.subr.mxu0 0.0
      %662 = vmatpush1.msra.mxu0 0.0
      %663 = vmatprep.subr.mxu0 0.0
      %664 = vmatpush1.msra.mxu0 0.0
      %665 = vmatprep.subr.mxu0 0.0
      %666 = vmatpush1.msra.mxu0 0.0
      %667 = vmatprep.subr.mxu0 0.0
      %668 = vmatpush1.msra.mxu0 0.0
      %669 = vmatprep.subr.mxu0 0.0
      %670 = vmatpush1.msra.mxu0 0.0
      %671 = vmatprep.subr.mxu0 0.0
      %672 = vmatpush1.msra.mxu0 0.0
      %673 = vmatprep.subr.mxu0 0.0
      %674 = vmatpush1.msra.mxu0 0.0
      %675 = vmatprep.subr.mxu0 0.0
      %676 = vmatpush1.msra.mxu0 0.0
      %677 = vmatprep.subr.mxu0 0.0
      %678 = vmatpush1.msra.mxu0 0.0
      %679 = vmatprep.subr.mxu0 0.0
      %680 = vmatpush1.msra.mxu0 0.0
      %681 = vmatprep.subr.mxu0 0.0
      %682 = vmatpush1.msra.mxu0 0.0
      %683 = vmatprep.subr.mxu0 0.0
      %684 = vmatpush1.msra.mxu0 %v651
      %685 = vmatprep.subr.mxu0 0.0
      %686 = vmatpush1.msra.mxu0 %v650
      %687 = vmatprep.subr.mxu0 0.0
      %688 = vmatpush1.msra.mxu0 %v649
      %689 = vmatprep.subr.mxu0 0.0
      %690 = vmatpush1.msra.mxu0 %v648
      %691 = vmatprep.subr.mxu0 0.0
      %692 = vmatpush2.msra.mxu0 0.0
      %693 = vmatprep.subr.mxu0 0.0
      %694 = vmatpush2.msra.mxu0 0.0
      %695 = vmatprep.subr.mxu0 0.0
      %696 = vmatpush2.msra.mxu0 0.0
      %697 = vmatprep.subr.mxu0 0.0
      %698 = vmatpush2.msra.mxu0 0.0
      %699 = vmatprep.subr.mxu0 0.0
      %700 = vmatpush2.msra.mxu0 0.0
      %701 = vmatprep.subr.mxu0 0.0
      %702 = vmatpush2.msra.mxu0 0.0
      %703 = vmatprep.subr.mxu0 0.0
      %704 = vmatpush2.msra.mxu0 0.0
      %705 = vmatprep.subr.mxu0 0.0
      %706 = vmatpush2.msra.mxu0 0.0
      %707 = vmatprep.subr.mxu0 0.0
      %708 = vmatpush2.msra.mxu0 0.0
      %709 = vmatprep.subr.mxu0 0.0
      %710 = vmatpush2.msra.mxu0 0.0
      %711 = vmatprep.subr.mxu0 0.0
      %712 = vmatpush2.msra.mxu0 0.0
      %713 = vmatprep.subr.mxu0 0.0
      %714 = vmatpush2.msra.mxu0 0.0
      %715 = vmatprep.subr.mxu0 0.0
      %716 = vmatpush2.msra.mxu0 0.0
      %717 = vmatprep.subr.mxu0 0.0
      %718 = vmatpush2.msra.mxu0 0.0
      %719 = vmatprep.subr.mxu0 0.0
      %720 = vmatpush2.msra.mxu0 0.0
      %721 = vmatprep.subr.mxu0 0.0
      %722 = vmatpush2.msra.mxu0 0.0
      %723 = vmatprep.mubr.f32.mxu0 0.0
      %724 = vmatmul.mubr.f32.gmra.mxu0 %v576
      %v725 = vpop.f32.mrf.mxu0
      %v726 = vadd.f32 %v657, %v725
      %v727 = vpop.f32.mrf.mxu0
      %728 = vdwg.mxu0
      %v729 = vmul.f32 %v645, 0.17677669
      %v731 = vlaneseq
      %v732 = vshrl.u32 %v731, 7
      %v733 = vsub.s32 0, %v732
      %v734 = vrot.slane %v532, %v733
      %vm736 = vcmask 64512
      %v738 = vsel %vm736, %v729, 0
      %v741 = vsel %vm736, %v645, 0
      %743 = vmatprep.subr.mxu0 0.0
      %744 = vmatpush1.xpose.msra.mxu0 0.0
      %745 = vmatprep.subr.mxu0 0.0
      %746 = vmatpush1.xpose.msra.mxu0 0.0
      %747 = vmatprep.subr.mxu0 0.0
      %748 = vmatpush1.xpose.msra.mxu0 0.0
      %749 = vmatprep.subr.mxu0 0.0
      %750 = vmatpush1.xpose.msra.mxu0 0.0
      %751 = vmatprep.subr.mxu0 0.0
      %752 = vmatpush1.xpose.msra.mxu0 0.0
      %753 = vmatprep.subr.mxu0 0.0
      %754 = vmatpush1.xpose.msra.mxu0 0.0
      %755 = vmatprep.subr.mxu0 0.0
      %756 = vmatpush1.xpose.msra.mxu0 0.0
      %757 = vmatprep.subr.mxu0 0.0
      %758 = vmatpush1.xpose.msra.mxu0 0.0
      %759 = vmatprep.subr.mxu0 0.0
      %760 = vmatpush1.xpose.msra.mxu0 0.0
      %761 = vmatprep.subr.mxu0 0.0
      %762 = vmatpush1.xpose.msra.mxu0 0.0
      %763 = vmatprep.subr.mxu0 0.0
      %764 = vmatpush1.xpose.msra.mxu0 0.0
      %765 = vmatprep.subr.mxu0 0.0
      %766 = vmatpush1.xpose.msra.mxu0 0.0
      %767 = vmatprep.subr.mxu0 0.0
      %768 = vmatpush1.xpose.msra.mxu0 0.0
      %769 = vmatprep.subr.mxu0 0.0
      %770 = vmatpush1.xpose.msra.mxu0 0.0
      %771 = vmatprep.subr.mxu0 0.0
      %772 = vmatpush1.xpose.msra.mxu0 0.0
      %773 = vmatprep.subr.mxu0 0.0
      %774 = vmatpush1.xpose.msra.mxu0 %v741
      %775 = vmatprep.subr.mxu0 0.0
      %776 = vmatpush2.xpose.msra.mxu0 0.0
      %777 = vmatprep.subr.mxu0 0.0
      %778 = vmatpush2.xpose.msra.mxu0 0.0
      %779 = vmatprep.subr.mxu0 0.0
      %780 = vmatpush2.xpose.msra.mxu0 0.0
      %781 = vmatprep.subr.mxu0 0.0
      %782 = vmatpush2.xpose.msra.mxu0 0.0
      %783 = vmatprep.subr.mxu0 0.0
      %784 = vmatpush2.xpose.msra.mxu0 0.0
      %785 = vmatprep.subr.mxu0 0.0
      %786 = vmatpush2.xpose.msra.mxu0 0.0
      %787 = vmatprep.subr.mxu0 0.0
      %788 = vmatpush2.xpose.msra.mxu0 0.0
      %789 = vmatprep.subr.mxu0 0.0
      %790 = vmatpush2.xpose.msra.mxu0 0.0
      %791 = vmatprep.subr.mxu0 0.0
      %792 = vmatpush2.xpose.msra.mxu0 0.0
      %793 = vmatprep.subr.mxu0 0.0
      %794 = vmatpush2.xpose.msra.mxu0 0.0
      %795 = vmatprep.subr.mxu0 0.0
      %796 = vmatpush2.xpose.msra.mxu0 0.0
      %797 = vmatprep.subr.mxu0 0.0
      %798 = vmatpush2.xpose.msra.mxu0 0.0
      %799 = vmatprep.subr.mxu0 0.0
      %800 = vmatpush2.xpose.msra.mxu0 0.0
      %801 = vmatprep.subr.mxu0 0.0
      %802 = vmatpush2.xpose.msra.mxu0 0.0
      %803 = vmatprep.subr.mxu0 0.0
      %804 = vmatpush2.xpose.msra.mxu0 0.0
      %805 = vmatprep.subr.mxu0 0.0
      %806 = vmatpush2.xpose.msra.mxu0 0.0
      %807 = vmatprep.mubr.f32.mxu0 0.0
      %808 = vmatmul.mubr.f32.gmra.mxu0 %v738
      %v809 = vpop.f32.mrf.mxu0
      %v810 = vadd.f32 %v734, %v809
      %v811 = vpop.f32.mrf.mxu0
      %812 = vdwg.mxu0
      %v813 = vsel %vm736, %v810, -inf
      %814 = vmax.xlane.f32.xlu0 %v813
      %v815 = vpop.xlane.xlu0 %814
      %v816 = vsub.f32 %v810, %v815
      %v817 = vmul.f32 %v816, 1.442695
      %v818 = vpow.pop %v817
      %v819 = vsel %vm736, %v818, 0.0
      %820 = vadd.xlane.f32.xlu0 %v819
      %v821 = vpop.xlane.xlu0 %820
      %v822 = vrcp.pop %v821
      %v823 = vmul.f32 %v818, %v822
      %v825 = vsel %vm736, %v823, 0
      %827 = vmatprep.subr.mxu0 0.0
      %828 = vmatpush1.msra.mxu0 0.0
      %829 = vmatprep.subr.mxu0 0.0
      %830 = vmatpush1.msra.mxu0 0.0
      %831 = vmatprep.subr.mxu0 0.0
      %832 = vmatpush1.msra.mxu0 0.0
      %833 = vmatprep.subr.mxu0 0.0
      %834 = vmatpush1.msra.mxu0 0.0
      %835 = vmatprep.subr.mxu0 0.0
      %836 = vmatpush1.msra.mxu0 0.0
      %837 = vmatprep.subr.mxu0 0.0
      %838 = vmatpush1.msra.mxu0 0.0
      %839 = vmatprep.subr.mxu0 0.0
      %840 = vmatpush1.msra.mxu0 0.0
      %841 = vmatprep.subr.mxu0 0.0
      %842 = vmatpush1.msra.mxu0 0.0
      %843 = vmatprep.subr.mxu0 0.0
      %844 = vmatpush1.msra.mxu0 0.0
      %845 = vmatprep.subr.mxu0 0.0
      %846 = vmatpush1.msra.mxu0 0.0
      %847 = vmatprep.subr.mxu0 0.0
      %848 = vmatpush1.msra.mxu0 0.0
      %849 = vmatprep.subr.mxu0 0.0
      %850 = vmatpush1.msra.mxu0 0.0
      %851 = vmatprep.subr.mxu0 0.0
      %852 = vmatpush1.msra.mxu0 0.0
      %853 = vmatprep.subr.mxu0 0.0
      %854 = vmatpush1.msra.mxu0 0.0
      %855 = vmatprep.subr.mxu0 0.0
      %856 = vmatpush1.msra.mxu0 0.0
      %857 = vmatprep.subr.mxu0 0.0
      %858 = vmatpush1.msra.mxu0 %v726
      %859 = vmatprep.subr.mxu0 0.0
      %860 = vmatpush2.msra.mxu0 0.0
      %861 = vmatprep.subr.mxu0 0.0
      %862 = vmatpush2.msra.mxu0 0.0
      %863 = vmatprep.subr.mxu0 0.0
      %864 = vmatpush2.msra.mxu0 0.0
      %865 = vmatprep.subr.mxu0 0.0
      %866 = vmatpush2.msra.mxu0 0.0
      %867 = vmatprep.subr.mxu0 0.0
      %868 = vmatpush2.msra.mxu0 0.0
      %869 = vmatprep.subr.mxu0 0.0
      %870 = vmatpush2.msra.mxu0 0.0
      %871 = vmatprep.subr.mxu0 0.0
      %872 = vmatpush2.msra.mxu0 0.0
      %873 = vmatprep.subr.mxu0 0.0
      %874 = vmatpush2.msra.mxu0 0.0
      %875 = vmatprep.subr.mxu0 0.0
      %876 = vmatpush2.msra.mxu0 0.0
      %877 = vmatprep.subr.mxu0 0.0
      %878 = vmatpush2.msra.mxu0 0.0
      %879 = vmatprep.subr.mxu0 0.0
      %880 = vmatpush2.msra.mxu0 0.0
      %881 = vmatprep.subr.mxu0 0.0
      %882 = vmatpush2.msra.mxu0 0.0
      %883 = vmatprep.subr.mxu0 0.0
      %884 = vmatpush2.msra.mxu0 0.0
      %885 = vmatprep.subr.mxu0 0.0
      %886 = vmatpush2.msra.mxu0 0.0
      %887 = vmatprep.subr.mxu0 0.0
      %888 = vmatpush2.msra.mxu0 0.0
      %889 = vmatprep.subr.mxu0 0.0
      %890 = vmatpush2.msra.mxu0 0.0
      %891 = vmatprep.mubr.f32.mxu0 0.0
      %892 = vmatmul.mubr.f32.gmra.mxu0 %v825
      %v893 = vpop.f32.mrf.mxu0
      %v894 = vadd.f32 0.0, %v893
      %v895 = vpop.f32.mrf.mxu0
      %896 = vdwg.mxu0
      %897 = vrot.lane.b32.xlu0 %v729, 120
      %v898 = vpop.permute.xlu0 %897
      %899 = vrot.lane.b32.xlu0 %v645, 120
      %v900 = vpop.permute.xlu0 %899
      %v901 = vsel %vm736, %v898, 0
      %v903 = vsel %vm736, %v900, 0
      %905 = vmatprep.subr.mxu0 0.0
      %906 = vmatpush1.xpose.msra.mxu0 0.0
      %907 = vmatprep.subr.mxu0 0.0
      %908 = vmatpush1.xpose.msra.mxu0 0.0
      %909 = vmatprep.subr.mxu0 0.0
      %910 = vmatpush1.xpose.msra.mxu0 0.0
      %911 = vmatprep.subr.mxu0 0.0
      %912 = vmatpush1.xpose.msra.mxu0 0.0
      %913 = vmatprep.subr.mxu0 0.0
      %914 = vmatpush1.xpose.msra.mxu0 0.0
      %915 = vmatprep.subr.mxu0 0.0
      %916 = vmatpush1.xpose.msra.mxu0 0.0
      %917 = vmatprep.subr.mxu0 0.0
      %918 = vmatpush1.xpose.msra.mxu0 0.0
      %919 = vmatprep.subr.mxu0 0.0
      %920 = vmatpush1.xpose.msra.mxu0 0.0
      %921 = vmatprep.subr.mxu0 0.0
      %922 = vmatpush1.xpose.msra.mxu0 0.0
      %923 = vmatprep.subr.mxu0 0.0
      %924 = vmatpush1.xpose.msra.mxu0 0.0
      %925 = vmatprep.subr.mxu0 0.0
      %926 = vmatpush1.xpose.msra.mxu0 0.0
      %927 = vmatprep.subr.mxu0 0.0
      %928 = vmatpush1.xpose.msra.mxu0 0.0
      %929 = vmatprep.subr.mxu0 0.0
      %930 = vmatpush1.xpose.msra.mxu0 0.0
      %931 = vmatprep.subr.mxu0 0.0
      %932 = vmatpush1.xpose.msra.mxu0 0.0
      %933 = vmatprep.subr.mxu0 0.0
      %934 = vmatpush1.xpose.msra.mxu0 0.0
      %935 = vmatprep.subr.mxu0 0.0
      %936 = vmatpush1.xpose.msra.mxu0 %v903
      %937 = vmatprep.subr.mxu0 0.0
      %938 = vmatpush2.xpose.msra.mxu0 0.0
      %939 = vmatprep.subr.mxu0 0.0
      %940 = vmatpush2.xpose.msra.mxu0 0.0
      %941 = vmatprep.subr.mxu0 0.0
      %942 = vmatpush2.xpose.msra.mxu0 0.0
      %943 = vmatprep.subr.mxu0 0.0
      %944 = vmatpush2.xpose.msra.mxu0 0.0
      %945 = vmatprep.subr.mxu0 0.0
      %946 = vmatpush2.xpose.msra.mxu0 0.0
      %947 = vmatprep.subr.mxu0 0.0
      %948 = vmatpush2.xpose.msra.mxu0 0.0
      %949 = vmatprep.subr.mxu0 0.0
      %950 = vmatpush2.xpose.msra.mxu0 0.0
      %951 = vmatprep.subr.mxu0 0.0
      %952 = vmatpush2.xpose.msra.mxu0 0.0
      %953 = vmatprep.subr.mxu0 0.0
      %954 = vmatpush2.xpose.msra.mxu0 0.0
      %955 = vmatprep.subr.mxu0 0.0
      %956 = vmatpush2.xpose.msra.mxu0 0.0
      %957 = vmatprep.subr.mxu0 0.0
      %958 = vmatpush2.xpose.msra.mxu0 0.0
      %959 = vmatprep.subr.mxu0 0.0
      %960 = vmatpush2.xpose.msra.mxu0 0.0
      %961 = vmatprep.subr.mxu0 0.0
      %962 = vmatpush2.xpose.msra.mxu0 0.0
      %963 = vmatprep.subr.mxu0 0.0
      %964 = vmatpush2.xpose.msra.mxu0 0.0
      %965 = vmatprep.subr.mxu0 0.0
      %966 = vmatpush2.xpose.msra.mxu0 0.0
      %967 = vmatprep.subr.mxu0 0.0
      %968 = vmatpush2.xpose.msra.mxu0 0.0
      %969 = vmatprep.mubr.f32.mxu0 0.0
      %970 = vmatmul.mubr.f32.gmra.mxu0 %v901
      %v971 = vpop.f32.mrf.mxu0
      %v972 = vadd.f32 %v734, %v971
      %v973 = vpop.f32.mrf.mxu0
      %974 = vdwg.mxu0
      %v975 = vsel %vm736, %v972, -inf
      %976 = vmax.xlane.f32.xlu0 %v975
      %v977 = vpop.xlane.xlu0 %976
      %v978 = vsub.f32 %v972, %v977
      %v979 = vmul.f32 %v978, 1.442695
      %v980 = vpow.pop %v979
      %v981 = vsel %vm736, %v980, 0.0
      %982 = vadd.xlane.f32.xlu0 %v981
      %v983 = vpop.xlane.xlu0 %982
      %v984 = vrcp.pop %v983
      %v985 = vmul.f32 %v980, %v984
      %987 = vrot.lane.b32.xlu0 %v726, 120
      %v988 = vpop.permute.xlu0 %987
      %v991 = vsel %vm736, %v985, 0
      %993 = vmatprep.subr.mxu0 0.0
      %994 = vmatpush1.msra.mxu0 0.0
      %995 = vmatprep.subr.mxu0 0.0
      %996 = vmatpush1.msra.mxu0 0.0
      %997 = vmatprep.subr.mxu0 0.0
      %998 = vmatpush1.msra.mxu0 0.0
      %999 = vmatprep.subr.mxu0 0.0
      %1000 = vmatpush1.msra.mxu0 0.0
      %1001 = vmatprep.subr.mxu0 0.0
      %1002 = vmatpush1.msra.mxu0 0.0
      %1003 = vmatprep.subr.mxu0 0.0
      %1004 = vmatpush1.msra.mxu0 0.0
      %1005 = vmatprep.subr.mxu0 0.0
      %1006 = vmatpush1.msra.mxu0 0.0
      %1007 = vmatprep.subr.mxu0 0.0
      %1008 = vmatpush1.msra.mxu0 0.0
      %1009 = vmatprep.subr.mxu0 0.0
      %1010 = vmatpush1.msra.mxu0 0.0
      %1011 = vmatprep.subr.mxu0 0.0
      %1012 = vmatpush1.msra.mxu0 0.0
      %1013 = vmatprep.subr.mxu0 0.0
      %1014 = vmatpush1.msra.mxu0 0.0
      %1015 = vmatprep.subr.mxu0 0.0
      %1016 = vmatpush1.msra.mxu0 0.0
      %1017 = vmatprep.subr.mxu0 0.0
      %1018 = vmatpush1.msra.mxu0 0.0
      %1019 = vmatprep.subr.mxu0 0.0
      %1020 = vmatpush1.msra.mxu0 0.0
      %1021 = vmatprep.subr.mxu0 0.0
      %1022 = vmatpush1.msra.mxu0 0.0
      %1023 = vmatprep.subr.mxu0 0.0
      %1024 = vmatpush1.msra.mxu0 %v988
      %1025 = vmatprep.subr.mxu0 0.0
      %1026 = vmatpush2.msra.mxu0 0.0
      %1027 = vmatprep.subr.mxu0 0.0
      %1028 = vmatpush2.msra.mxu0 0.0
      %1029 = vmatprep.subr.mxu0 0.0
      %1030 = vmatpush2.msra.mxu0 0.0
      %1031 = vmatprep.subr.mxu0 0.0
      %1032 = vmatpush2.msra.mxu0 0.0
      %1033 = vmatprep.subr.mxu0 0.0
      %1034 = vmatpush2.msra.mxu0 0.0
      %1035 = vmatprep.subr.mxu0 0.0
      %1036 = vmatpush2.msra.mxu0 0.0
      %1037 = vmatprep.subr.mxu0 0.0
      %1038 = vmatpush2.msra.mxu0 0.0
      %1039 = vmatprep.subr.mxu0 0.0
      %1040 = vmatpush2.msra.mxu0 0.0
      %1041 = vmatprep.subr.mxu0 0.0
      %1042 = vmatpush2.msra.mxu0 0.0
      %1043 = vmatprep.subr.mxu0 0.0
      %1044 = vmatpush2.msra.mxu0 0.0
      %1045 = vmatprep.subr.mxu0 0.0
      %1046 = vmatpush2.msra.mxu0 0.0
      %1047 = vmatprep.subr.mxu0 0.0
      %1048 = vmatpush2.msra.mxu0 0.0
      %1049 = vmatprep.subr.mxu0 0.0
      %1050 = vmatpush2.msra.mxu0 0.0
      %1051 = vmatprep.subr.mxu0 0.0
      %1052 = vmatpush2.msra.mxu0 0.0
      %1053 = vmatprep.subr.mxu0 0.0
      %1054 = vmatpush2.msra.mxu0 0.0
      %1055 = vmatprep.subr.mxu0 0.0
      %1056 = vmatpush2.msra.mxu0 0.0
      %1057 = vmatprep.mubr.f32.mxu0 0.0
      %1058 = vmatmul.mubr.f32.gmra.mxu0 %v991
      %v1059 = vpop.f32.mrf.mxu0
      %v1060 = vadd.f32 0.0, %v1059
      %v1061 = vpop.f32.mrf.mxu0
      %1062 = vdwg.mxu0
      %1063 = vrot.lane.b32.xlu0 %v729, 112
      %v1064 = vpop.permute.xlu0 %1063
      %1065 = vrot.lane.b32.xlu0 %v645, 112
      %v1066 = vpop.permute.xlu0 %1065
      %v1067 = vsel %vm736, %v1064, 0
      %v1069 = vsel %vm736, %v1066, 0
      %1071 = vmatprep.subr.mxu0 0.0
      %1072 = vmatpush1.xpose.msra.mxu0 0.0
      %1073 = vmatprep.subr.mxu0 0.0
      %1074 = vmatpush1.xpose.msra.mxu0 0.0
      %1075 = vmatprep.subr.mxu0 0.0
      %1076 = vmatpush1.xpose.msra.mxu0 0.0
      %1077 = vmatprep.subr.mxu0 0.0
      %1078 = vmatpush1.xpose.msra.mxu0 0.0
      %1079 = vmatprep.subr.mxu0 0.0
      %1080 = vmatpush1.xpose.msra.mxu0 0.0
      %1081 = vmatprep.subr.mxu0 0.0
      %1082 = vmatpush1.xpose.msra.mxu0 0.0
      %1083 = vmatprep.subr.mxu0 0.0
      %1084 = vmatpush1.xpose.msra.mxu0 0.0
      %1085 = vmatprep.subr.mxu0 0.0
      %1086 = vmatpush1.xpose.msra.mxu0 0.0
      %1087 = vmatprep.subr.mxu0 0.0
      %1088 = vmatpush1.xpose.msra.mxu0 0.0
      %1089 = vmatprep.subr.mxu0 0.0
      %1090 = vmatpush1.xpose.msra.mxu0 0.0
      %1091 = vmatprep.subr.mxu0 0.0
      %1092 = vmatpush1.xpose.msra.mxu0 0.0
      %1093 = vmatprep.subr.mxu0 0.0
      %1094 = vmatpush1.xpose.msra.mxu0 0.0
      %1095 = vmatprep.subr.mxu0 0.0
      %1096 = vmatpush1.xpose.msra.mxu0 0.0
      %1097 = vmatprep.subr.mxu0 0.0
      %1098 = vmatpush1.xpose.msra.mxu0 0.0
      %1099 = vmatprep.subr.mxu0 0.0
      %1100 = vmatpush1.xpose.msra.mxu0 0.0
      %1101 = vmatprep.subr.mxu0 0.0
      %1102 = vmatpush1.xpose.msra.mxu0 %v1069
      %1103 = vmatprep.subr.mxu0 0.0
      %1104 = vmatpush2.xpose.msra.mxu0 0.0
      %1105 = vmatprep.subr.mxu0 0.0
      %1106 = vmatpush2.xpose.msra.mxu0 0.0
      %1107 = vmatprep.subr.mxu0 0.0
      %1108 = vmatpush2.xpose.msra.mxu0 0.0
      %1109 = vmatprep.subr.mxu0 0.0
      %1110 = vmatpush2.xpose.msra.mxu0 0.0
      %1111 = vmatprep.subr.mxu0 0.0
      %1112 = vmatpush2.xpose.msra.mxu0 0.0
      %1113 = vmatprep.subr.mxu0 0.0
      %1114 = vmatpush2.xpose.msra.mxu0 0.0
      %1115 = vmatprep.subr.mxu0 0.0
      %1116 = vmatpush2.xpose.msra.mxu0 0.0
      %1117 = vmatprep.subr.mxu0 0.0
      %1118 = vmatpush2.xpose.msra.mxu0 0.0
      %1119 = vmatprep.subr.mxu0 0.0
      %1120 = vmatpush2.xpose.msra.mxu0 0.0
      %1121 = vmatprep.subr.mxu0 0.0
      %1122 = vmatpush2.xpose.msra.mxu0 0.0
      %1123 = vmatprep.subr.mxu0 0.0
      %1124 = vmatpush2.xpose.msra.mxu0 0.0
      %1125 = vmatprep.subr.mxu0 0.0
      %1126 = vmatpush2.xpose.msra.mxu0 0.0
      %1127 = vmatprep.subr.mxu0 0.0
      %1128 = vmatpush2.xpose.msra.mxu0 0.0
      %1129 = vmatprep.subr.mxu0 0.0
      %1130 = vmatpush2.xpose.msra.mxu0 0.0
      %1131 = vmatprep.subr.mxu0 0.0
      %1132 = vmatpush2.xpose.msra.mxu0 0.0
      %1133 = vmatprep.subr.mxu0 0.0
      %1134 = vmatpush2.xpose.msra.mxu0 0.0
      %1135 = vmatprep.mubr.f32.mxu0 0.0
      %1136 = vmatmul.mubr.f32.gmra.mxu0 %v1067
      %v1137 = vpop.f32.mrf.mxu0
      %v1138 = vadd.f32 %v734, %v1137
      %v1139 = vpop.f32.mrf.mxu0
      %1140 = vdwg.mxu0
      %v1141 = vsel %vm736, %v1138, -inf
      %1142 = vmax.xlane.f32.xlu0 %v1141
      %v1143 = vpop.xlane.xlu0 %1142
      %v1144 = vsub.f32 %v1138, %v1143
      %v1145 = vmul.f32 %v1144, 1.442695
      %v1146 = vpow.pop %v1145
      %v1147 = vsel %vm736, %v1146, 0.0
      %1148 = vadd.xlane.f32.xlu0 %v1147
      %v1149 = vpop.xlane.xlu0 %1148
      %v1150 = vrcp.pop %v1149
      %v1151 = vmul.f32 %v1146, %v1150
      %1152 = vrot.lane.b32.xlu0 %v726, 112
      %v1153 = vpop.permute.xlu0 %1152
      %v1156 = vsel %vm736, %v1151, 0
      %1158 = vmatprep.subr.mxu0 0.0
      %1159 = vmatpush1.msra.mxu0 0.0
      %1160 = vmatprep.subr.mxu0 0.0
      %1161 = vmatpush1.msra.mxu0 0.0
      %1162 = vmatprep.subr.mxu0 0.0
      %1163 = vmatpush1.msra.mxu0 0.0
      %1164 = vmatprep.subr.mxu0 0.0
      %1165 = vmatpush1.msra.mxu0 0.0
      %1166 = vmatprep.subr.mxu0 0.0
      %1167 = vmatpush1.msra.mxu0 0.0
      %1168 = vmatprep.subr.mxu0 0.0
      %1169 = vmatpush1.msra.mxu0 0.0
      %1170 = vmatprep.subr.mxu0 0.0
      %1171 = vmatpush1.msra.mxu0 0.0
      %1172 = vmatprep.subr.mxu0 0.0
      %1173 = vmatpush1.msra.mxu0 0.0
      %1174 = vmatprep.subr.mxu0 0.0
      %1175 = vmatpush1.msra.mxu0 0.0
      %1176 = vmatprep.subr.mxu0 0.0
      %1177 = vmatpush1.msra.mxu0 0.0
      %1178 = vmatprep.subr.mxu0 0.0
      %1179 = vmatpush1.msra.mxu0 0.0
      %1180 = vmatprep.subr.mxu0 0.0
      %1181 = vmatpush1.msra.mxu0 0.0
      %1182 = vmatprep.subr.mxu0 0.0
      %1183 = vmatpush1.msra.mxu0 0.0
      %1184 = vmatprep.subr.mxu0 0.0
      %1185 = vmatpush1.msra.mxu0 0.0
      %1186 = vmatprep.subr.mxu0 0.0
      %1187 = vmatpush1.msra.mxu0 0.0
      %1188 = vmatprep.subr.mxu0 0.0
      %1189 = vmatpush1.msra.mxu0 %v1153
      %1190 = vmatprep.subr.mxu0 0.0
      %1191 = vmatpush2.msra.mxu0 0.0
      %1192 = vmatprep.subr.mxu0 0.0
      %1193 = vmatpush2.msra.mxu0 0.0
      %1194 = vmatprep.subr.mxu0 0.0
      %1195 = vmatpush2.msra.mxu0 0.0
      %1196 = vmatprep.subr.mxu0 0.0
      %1197 = vmatpush2.msra.mxu0 0.0
      %1198 = vmatprep.subr.mxu0 0.0
      %1199 = vmatpush2.msra.mxu0 0.0
      %1200 = vmatprep.subr.mxu0 0.0
      %1201 = vmatpush2.msra.mxu0 0.0
      %1202 = vmatprep.subr.mxu0 0.0
      %1203 = vmatpush2.msra.mxu0 0.0
      %1204 = vmatprep.subr.mxu0 0.0
      %1205 = vmatpush2.msra.mxu0 0.0
      %1206 = vmatprep.subr.mxu0 0.0
      %1207 = vmatpush2.msra.mxu0 0.0
      %1208 = vmatprep.subr.mxu0 0.0
      %1209 = vmatpush2.msra.mxu0 0.0
      %1210 = vmatprep.subr.mxu0 0.0
      %1211 = vmatpush2.msra.mxu0 0.0
      %1212 = vmatprep.subr.mxu0 0.0
      %1213 = vmatpush2.msra.mxu0 0.0
      %1214 = vmatprep.subr.mxu0 0.0
      %1215 = vmatpush2.msra.mxu0 0.0
      %1216 = vmatprep.subr.mxu0 0.0
      %1217 = vmatpush2.msra.mxu0 0.0
      %1218 = vmatprep.subr.mxu0 0.0
      %1219 = vmatpush2.msra.mxu0 0.0
      %1220 = vmatprep.subr.mxu0 0.0
      %1221 = vmatpush2.msra.mxu0 0.0
      %1222 = vmatprep.mubr.f32.mxu0 0.0
      %1223 = vmatmul.mubr.f32.gmra.mxu0 %v1156
      %v1224 = vpop.f32.mrf.mxu0
      %v1225 = vadd.f32 0.0, %v1224
      %v1226 = vpop.f32.mrf.mxu0
      %1227 = vdwg.mxu0
      %1228 = vrot.lane.b32.xlu0 %v729, 104
      %v1229 = vpop.permute.xlu0 %1228
      %1230 = vrot.lane.b32.xlu0 %v645, 104
      %v1231 = vpop.permute.xlu0 %1230
      %v1232 = vsel %vm736, %v1229, 0
      %v1234 = vsel %vm736, %v1231, 0
      %1236 = vmatprep.subr.mxu0 0.0
      %1237 = vmatpush1.xpose.msra.mxu0 0.0
      %1238 = vmatprep.subr.mxu0 0.0
      %1239 = vmatpush1.xpose.msra.mxu0 0.0
      %1240 = vmatprep.subr.mxu0 0.0
      %1241 = vmatpush1.xpose.msra.mxu0 0.0
      %1242 = vmatprep.subr.mxu0 0.0
      %1243 = vmatpush1.xpose.msra.mxu0 0.0
      %1244 = vmatprep.subr.mxu0 0.0
      %1245 = vmatpush1.xpose.msra.mxu0 0.0
      %1246 = vmatprep.subr.mxu0 0.0
      %1247 = vmatpush1.xpose.msra.mxu0 0.0
      %1248 = vmatprep.subr.mxu0 0.0
      %1249 = vmatpush1.xpose.msra.mxu0 0.0
      %1250 = vmatprep.subr.mxu0 0.0
      %1251 = vmatpush1.xpose.msra.mxu0 0.0
      %1252 = vmatprep.subr.mxu0 0.0
      %1253 = vmatpush1.xpose.msra.mxu0 0.0
      %1254 = vmatprep.subr.mxu0 0.0
      %1255 = vmatpush1.xpose.msra.mxu0 0.0
      %1256 = vmatprep.subr.mxu0 0.0
      %1257 = vmatpush1.xpose.msra.mxu0 0.0
      %1258 = vmatprep.subr.mxu0 0.0
      %1259 = vmatpush1.xpose.msra.mxu0 0.0
      %1260 = vmatprep.subr.mxu0 0.0
      %1261 = vmatpush1.xpose.msra.mxu0 0.0
      %1262 = vmatprep.subr.mxu0 0.0
      %1263 = vmatpush1.xpose.msra.mxu0 0.0
      %1264 = vmatprep.subr.mxu0 0.0
      %1265 = vmatpush1.xpose.msra.mxu0 0.0
      %1266 = vmatprep.subr.mxu0 0.0
      %1267 = vmatpush1.xpose.msra.mxu0 %v1234
      %1268 = vmatprep.subr.mxu0 0.0
      %1269 = vmatpush2.xpose.msra.mxu0 0.0
      %1270 = vmatprep.subr.mxu0 0.0
      %1271 = vmatpush2.xpose.msra.mxu0 0.0
      %1272 = vmatprep.subr.mxu0 0.0
      %1273 = vmatpush2.xpose.msra.mxu0 0.0
      %1274 = vmatprep.subr.mxu0 0.0
      %1275 = vmatpush2.xpose.msra.mxu0 0.0
      %1276 = vmatprep.subr.mxu0 0.0
      %1277 = vmatpush2.xpose.msra.mxu0 0.0
      %1278 = vmatprep.subr.mxu0 0.0
      %1279 = vmatpush2.xpose.msra.mxu0 0.0
      %1280 = vmatprep.subr.mxu0 0.0
      %1281 = vmatpush2.xpose.msra.mxu0 0.0
      %1282 = vmatprep.subr.mxu0 0.0
      %1283 = vmatpush2.xpose.msra.mxu0 0.0
      %1284 = vmatprep.subr.mxu0 0.0
      %1285 = vmatpush2.xpose.msra.mxu0 0.0
      %1286 = vmatprep.subr.mxu0 0.0
      %1287 = vmatpush2.xpose.msra.mxu0 0.0
      %1288 = vmatprep.subr.mxu0 0.0
      %1289 = vmatpush2.xpose.msra.mxu0 0.0
      %1290 = vmatprep.subr.mxu0 0.0
      %1291 = vmatpush2.xpose.msra.mxu0 0.0
      %1292 = vmatprep.subr.mxu0 0.0
      %1293 = vmatpush2.xpose.msra.mxu0 0.0
      %1294 = vmatprep.subr.mxu0 0.0
      %1295 = vmatpush2.xpose.msra.mxu0 0.0
      %1296 = vmatprep.subr.mxu0 0.0
      %1297 = vmatpush2.xpose.msra.mxu0 0.0
      %1298 = vmatprep.subr.mxu0 0.0
      %1299 = vmatpush2.xpose.msra.mxu0 0.0
      %1300 = vmatprep.mubr.f32.mxu0 0.0
      %1301 = vmatmul.mubr.f32.gmra.mxu0 %v1232
      %v1302 = vpop.f32.mrf.mxu0
      %v1303 = vadd.f32 %v734, %v1302
      %v1304 = vpop.f32.mrf.mxu0
      %1305 = vdwg.mxu0
      %v1306 = vsel %vm736, %v1303, -inf
      %1307 = vmax.xlane.f32.xlu0 %v1306
      %v1308 = vpop.xlane.xlu0 %1307
      %v1309 = vsub.f32 %v1303, %v1308
      %v1310 = vmul.f32 %v1309, 1.442695
      %v1311 = vpow.pop %v1310
      %v1312 = vsel %vm736, %v1311, 0.0
      %1313 = vadd.xlane.f32.xlu0 %v1312
      %v1314 = vpop.xlane.xlu0 %1313
      %v1315 = vrcp.pop %v1314
      %v1316 = vmul.f32 %v1311, %v1315
      %1317 = vrot.lane.b32.xlu0 %v726, 104
      %v1318 = vpop.permute.xlu0 %1317
      %v1321 = vsel %vm736, %v1316, 0
      %1323 = vmatprep.subr.mxu0 0.0
      %1324 = vmatpush1.msra.mxu0 0.0
      %1325 = vmatprep.subr.mxu0 0.0
      %1326 = vmatpush1.msra.mxu0 0.0
      %1327 = vmatprep.subr.mxu0 0.0
      %1328 = vmatpush1.msra.mxu0 0.0
      %1329 = vmatprep.subr.mxu0 0.0
      %1330 = vmatpush1.msra.mxu0 0.0
      %1331 = vmatprep.subr.mxu0 0.0
      %1332 = vmatpush1.msra.mxu0 0.0
      %1333 = vmatprep.subr.mxu0 0.0
      %1334 = vmatpush1.msra.mxu0 0.0
      %1335 = vmatprep.subr.mxu0 0.0
      %1336 = vmatpush1.msra.mxu0 0.0
      %1337 = vmatprep.subr.mxu0 0.0
      %1338 = vmatpush1.msra.mxu0 0.0
      %1339 = vmatprep.subr.mxu0 0.0
      %1340 = vmatpush1.msra.mxu0 0.0
      %1341 = vmatprep.subr.mxu0 0.0
      %1342 = vmatpush1.msra.mxu0 0.0
      %1343 = vmatprep.subr.mxu0 0.0
      %1344 = vmatpush1.msra.mxu0 0.0
      %1345 = vmatprep.subr.mxu0 0.0
      %1346 = vmatpush1.msra.mxu0 0.0
      %1347 = vmatprep.subr.mxu0 0.0
      %1348 = vmatpush1.msra.mxu0 0.0
      %1349 = vmatprep.subr.mxu0 0.0
      %1350 = vmatpush1.msra.mxu0 0.0
      %1351 = vmatprep.subr.mxu0 0.0
      %1352 = vmatpush1.msra.mxu0 0.0
      %1353 = vmatprep.subr.mxu0 0.0
      %1354 = vmatpush1.msra.mxu0 %v1318
      %1355 = vmatprep.subr.mxu0 0.0
      %1356 = vmatpush2.msra.mxu0 0.0
      %1357 = vmatprep.subr.mxu0 0.0
      %1358 = vmatpush2.msra.mxu0 0.0
      %1359 = vmatprep.subr.mxu0 0.0
      %1360 = vmatpush2.msra.mxu0 0.0
      %1361 = vmatprep.subr.mxu0 0.0
      %1362 = vmatpush2.msra.mxu0 0.0
      %1363 = vmatprep.subr.mxu0 0.0
      %1364 = vmatpush2.msra.mxu0 0.0
      %1365 = vmatprep.subr.mxu0 0.0
      %1366 = vmatpush2.msra.mxu0 0.0
      %1367 = vmatprep.subr.mxu0 0.0
      %1368 = vmatpush2.msra.mxu0 0.0
      %1369 = vmatprep.subr.mxu0 0.0
      %1370 = vmatpush2.msra.mxu0 0.0
      %1371 = vmatprep.subr.mxu0 0.0
      %1372 = vmatpush2.msra.mxu0 0.0
      %1373 = vmatprep.subr.mxu0 0.0
      %1374 = vmatpush2.msra.mxu0 0.0
      %1375 = vmatprep.subr.mxu0 0.0
      %1376 = vmatpush2.msra.mxu0 0.0
      %1377 = vmatprep.subr.mxu0 0.0
      %1378 = vmatpush2.msra.mxu0 0.0
      %1379 = vmatprep.subr.mxu0 0.0
      %1380 = vmatpush2.msra.mxu0 0.0
      %1381 = vmatprep.subr.mxu0 0.0
      %1382 = vmatpush2.msra.mxu0 0.0
      %1383 = vmatprep.subr.mxu0 0.0
      %1384 = vmatpush2.msra.mxu0 0.0
      %1385 = vmatprep.subr.mxu0 0.0
      %1386 = vmatpush2.msra.mxu0 0.0
      %1387 = vmatprep.mubr.f32.mxu0 0.0
      %1388 = vmatmul.mubr.f32.gmra.mxu0 %v1321
      %v1389 = vpop.f32.mrf.mxu0
      %v1390 = vadd.f32 0.0, %v1389
      %v1391 = vpop.f32.mrf.mxu0
      %1392 = vdwg.mxu0
      %1394 = vrot.lane.b32.xlu0 %v1060, 8
      %v1395 = vpop.permute.xlu0 %1394
      %1398 = vrot.lane.b32.xlu0 %v1225, 16
      %v1399 = vpop.permute.xlu0 %1398
      %1402 = vrot.lane.b32.xlu0 %v1390, 24
      %v1403 = vpop.permute.xlu0 %1402
      %v1405 = vsel %vm736, %v894, %v1395
      %vm1406 = vcmask 130048
      %v1407 = vsel %vm1406, %v1405, %v1399
      %vm1408 = vcmask 195584
      %v1409 = vsel %vm1408, %v1407, %v1403
      %v1410 = vld [vmem:[%s8] sm:$0xff]
      %v1411 = vld [vmem:[%s8 + $0x8] sm:$0xff]
      %v1412 = vld [vmem:[%s8 + $0x10] sm:$0xff]
      %v1413 = vld [vmem:[%s8 + $0x18] sm:$0xff]
      %v1414 = vld [vmem:[%s9] sm:$0x1]
      %v1416 = vlaneseq
      %v1417 = vshrl.u32 %v1416, 7
      %v1418 = vsub.s32 0, %v1417
      %v1419 = vrot.slane %v1414, %v1418
      %v1422 = vsel %vm533, %v1409, 0
      %1424 = vmatprep.subr.mxu0 0.0
      %1425 = vmatpush1.msra.mxu0 0.0
      %1426 = vmatprep.subr.mxu0 0.0
      %1427 = vmatpush1.msra.mxu0 0.0
      %1428 = vmatprep.subr.mxu0 0.0
      %1429 = vmatpush1.msra.mxu0 0.0
      %1430 = vmatprep.subr.mxu0 0.0
      %1431 = vmatpush1.msra.mxu0 0.0
      %1432 = vmatprep.subr.mxu0 0.0
      %1433 = vmatpush1.msra.mxu0 0.0
      %1434 = vmatprep.subr.mxu0 0.0
      %1435 = vmatpush1.msra.mxu0 0.0
      %1436 = vmatprep.subr.mxu0 0.0
      %1437 = vmatpush1.msra.mxu0 0.0
      %1438 = vmatprep.subr.mxu0 0.0
      %1439 = vmatpush1.msra.mxu0 0.0
      %1440 = vmatprep.subr.mxu0 0.0
      %1441 = vmatpush1.msra.mxu0 0.0
      %1442 = vmatprep.subr.mxu0 0.0
      %1443 = vmatpush1.msra.mxu0 0.0
      %1444 = vmatprep.subr.mxu0 0.0
      %1445 = vmatpush1.msra.mxu0 0.0
      %1446 = vmatprep.subr.mxu0 0.0
      %1447 = vmatpush1.msra.mxu0 0.0
      %1448 = vmatprep.subr.mxu0 0.0
      %1449 = vmatpush1.msra.mxu0 %v1413
      %1450 = vmatprep.subr.mxu0 0.0
      %1451 = vmatpush1.msra.mxu0 %v1412
      %1452 = vmatprep.subr.mxu0 0.0
      %1453 = vmatpush1.msra.mxu0 %v1411
      %1454 = vmatprep.subr.mxu0 0.0
      %1455 = vmatpush1.msra.mxu0 %v1410
      %1456 = vmatprep.subr.mxu0 0.0
      %1457 = vmatpush2.msra.mxu0 0.0
      %1458 = vmatprep.subr.mxu0 0.0
      %1459 = vmatpush2.msra.mxu0 0.0
      %1460 = vmatprep.subr.mxu0 0.0
      %1461 = vmatpush2.msra.mxu0 0.0
      %1462 = vmatprep.subr.mxu0 0.0
      %1463 = vmatpush2.msra.mxu0 0.0
      %1464 = vmatprep.subr.mxu0 0.0
      %1465 = vmatpush2.msra.mxu0 0.0
      %1466 = vmatprep.subr.mxu0 0.0
      %1467 = vmatpush2.msra.mxu0 0.0
      %1468 = vmatprep.subr.mxu0 0.0
      %1469 = vmatpush2.msra.mxu0 0.0
      %1470 = vmatprep.subr.mxu0 0.0
      %1471 = vmatpush2.msra.mxu0 0.0
      %1472 = vmatprep.subr.mxu0 0.0
      %1473 = vmatpush2.msra.mxu0 0.0
      %1474 = vmatprep.subr.mxu0 0.0
      %1475 = vmatpush2.msra.mxu0 0.0
      %1476 = vmatprep.subr.mxu0 0.0
      %1477 = vmatpush2.msra.mxu0 0.0
      %1478 = vmatprep.subr.mxu0 0.0
      %1479 = vmatpush2.msra.mxu0 0.0
      %1480 = vmatprep.subr.mxu0 0.0
      %1481 = vmatpush2.msra.mxu0 0.0
      %1482 = vmatprep.subr.mxu0 0.0
      %1483 = vmatpush2.msra.mxu0 0.0
      %1484 = vmatprep.subr.mxu0 0.0
      %1485 = vmatpush2.msra.mxu0 0.0
      %1486 = vmatprep.subr.mxu0 0.0
      %1487 = vmatpush2.msra.mxu0 0.0
      %1488 = vmatprep.mubr.f32.mxu0 0.0
      %1489 = vmatmul.mubr.f32.gmra.mxu0 %v1422
      %v1490 = vpop.f32.mrf.mxu0
      %v1491 = vadd.f32 %v1419, %v1490
      %v1492 = vpop.f32.mrf.mxu0
      %1493 = vdwg.mxu0
      %v1494 = vadd.f32 %v531, %v1491
      %v1495 = vsel %vm533, %v1494, 0.0
      %1496 = vadd.xlane.f32.xlu0 %v1495
      %v1497 = vpop.xlane.xlu0 %1496
      %v1498 = vmul.f32 %v1497, %v537
      %v1499 = vsub.f32 %v1494, %v1498
      %v1500 = vmul.f32 %v1499, %v1499
      %v1501 = vsel %vm533, %v1500, 0.0
      %1502 = vadd.xlane.f32.xlu0 %v1501
      %v1503 = vpop.xlane.xlu0 %1502
      %v1504 = vmul.f32 %v1503, %v537
      %v1505 = vadd.f32 %v1504, 1e-05
      %v1506 = vrsqrt.pop %v1505
      %v1507 = vmul.f32 %v1499, %v1506
      %v1508 = vld [vmem:[%s10] sm:$0x1]
      %v1510 = vlaneseq
      %v1511 = vshrl.u32 %v1510, 7
      %v1512 = vsub.s32 0, %v1511
      %v1513 = vrot.slane %v1508, %v1512
      %v1515 = vmul.f32 %v1507, %v1513
      %v1516 = vld [vmem:[%s11] sm:$0x1]
      %v1518 = vlaneseq
      %v1519 = vshrl.u32 %v1518, 7
      %v1520 = vsub.s32 0, %v1519
      %v1521 = vrot.slane %v1516, %v1520
      %v1523 = vadd.f32 %v1515, %v1521
      %v1524 = vld [vmem:[%s12] sm:$0xff]
      %v1525 = vld [vmem:[%s12 + $0x8] sm:$0xff]
      %v1526 = vld [vmem:[%s12 + $0x10] sm:$0xff]
      %v1527 = vld [vmem:[%s12 + $0x18] sm:$0xff]
      %v1528 = vld [vmem:[%s13] sm:$0x1]
      %v1530 = vlaneseq
      %v1531 = vshrl.u32 %v1530, 7
      %v1532 = vsub.s32 0, %v1531
      %v1533 = vrot.slane %v1528, %v1532
      %v1536 = vsel %vm533, %v1523, 0
      %1538 = vmatprep.subr.mxu0 0.0
      %1539 = vmatpush1.msra.mxu0 0.0
      %1540 = vmatprep.subr.mxu0 0.0
      %1541 = vmatpush1.msra.mxu0 0.0
      %1542 = vmatprep.subr.mxu0 0.0
      %1543 = vmatpush1.msra.mxu0 0.0
      %1544 = vmatprep.subr.mxu0 0.0
      %1545 = vmatpush1.msra.mxu0 0.0
      %1546 = vmatprep.subr.mxu0 0.0
      %1547 = vmatpush1.msra.mxu0 0.0
      %1548 = vmatprep.subr.mxu0 0.0
      %1549 = vmatpush1.msra.mxu0 0.0
      %1550 = vmatprep.subr.mxu0 0.0
      %1551 = vmatpush1.msra.mxu0 0.0
      %1552 = vmatprep.subr.mxu0 0.0
      %1553 = vmatpush1.msra.mxu0 0.0
      %1554 = vmatprep.subr.mxu0 0.0
      %1555 = vmatpush1.msra.mxu0 0.0
      %1556 = vmatprep.subr.mxu0 0.0
      %1557 = vmatpush1.msra.mxu0 0.0
      %1558 = vmatprep.subr.mxu0 0.0
      %1559 = vmatpush1.msra.mxu0 0.0
      %1560 = vmatprep.subr.mxu0 0.0
      %1561 = vmatpush1.msra.mxu0 0.0
      %1562 = vmatprep.subr.mxu0 0.0
      %1563 = vmatpush1.msra.mxu0 %v1527
      %1564 = vmatprep.subr.mxu0 0.0
      %1565 = vmatpush1.msra.mxu0 %v1526
      %1566 = vmatprep.subr.mxu0 0.0
      %1567 = vmatpush1.msra.mxu0 %v1525
      %1568 = vmatprep.subr.mxu0 0.0
      %1569 = vmatpush1.msra.mxu0 %v1524
      %1570 = vmatprep.subr.mxu0 0.0
      %1571 = vmatpush2.msra.mxu0 0.0
      %1572 = vmatprep.subr.mxu0 0.0
      %1573 = vmatpush2.msra.mxu0 0.0
      %1574 = vmatprep.subr.mxu0 0.0
      %1575 = vmatpush2.msra.mxu0 0.0
      %1576 = vmatprep.subr.mxu0 0.0
      %1577 = vmatpush2.msra.mxu0 0.0
      %1578 = vmatprep.subr.mxu0 0.0
      %1579 = vmatpush2.msra.mxu0 0.0
      %1580 = vmatprep.subr.mxu0 0.0
      %1581 = vmatpush2.msra.mxu0 0.0
      %1582 = vmatprep.subr.mxu0 0.0
      %1583 = vmatpush2.msra.mxu0 0.0
      %1584 = vmatprep.subr.mxu0 0.0
      %1585 = vmatpush2.msra.mxu0 0.0
      %1586 = vmatprep.subr.mxu0 0.0
      %1587 = vmatpush2.msra.mxu0 0.0
      %1588 = vmatprep.subr.mxu0 0.0
      %1589 = vmatpush2.msra.mxu0 0.0
      %1590 = vmatprep.subr.mxu0 0.0
      %1591 = vmatpush2.msra.mxu0 0.0
      %1592 = vmatprep.subr.mxu0 0.0
      %1593 = vmatpush2.msra.mxu0 0.0
      %1594 = vmatprep.subr.mxu0 0.0
      %1595 = vmatpush2.msra.mxu0 0.0
      %1596 = vmatprep.subr.mxu0 0.0
      %1597 = vmatpush2.msra.mxu0 0.0
      %1598 = vmatprep.subr.mxu0 0.0
      %1599 = vmatpush2.msra.mxu0 0.0
      %1600 = vmatprep.subr.mxu0 0.0
      %1601 = vmatpush2.msra.mxu0 0.0
      %1602 = vmatprep.mubr.f32.mxu0 0.0
      %1603 = vmatmul.mubr.f32.gmra.mxu0 %v1536
      %v1604 = vpop.f32.mrf.mxu0
      %v1605 = vadd.f32 %v1533, %v1604
      %v1606 = vpop.f32.mrf.mxu0
      %1607 = vdwg.mxu0
      %v1608 = vmul.f32 %v1605, 0.5
      %v1609 = vmul.f32 %v1605, 0.70710677
      %vm1610 = vcmp.ge.f32.partialorder %v1609, 0.0
      %v1611 = vsel %vm1610, 1.0, -1.0
      %v1612 = vand.u32 2147483647, %v1609
      %v1613 = vmul.f32 %v1612, 0.3275911
      %v1614 = vadd.f32 %v1613, 1.0
      %v1615 = vrcp.pop %v1614
      %v1616 = vmul.f32 %v1615, 1.0614054
      %v1617 = vadd.f32 %v1616, -1.4531521
      %v1618 = vmul.f32 %v1617, %v1615
      %v1619 = vadd.f32 %v1618, 1.4214138
      %v1620 = vmul.f32 %v1619, %v1615
      %v1621 = vadd.f32 %v1620, -0.28449672
      %v1622 = vmul.f32 %v1621, %v1615
      %v1623 = vadd.f32 %v1622, 0.2548296
      %v1624 = vmul.f32 %v1623, %v1615
      %v1625 = vsub.f32 0.0, %v1612
      %v1626 = vmul.f32 %v1625, %v1612
      %v1627 = vmul.f32 %v1626, 1.442695
      %v1628 = vpow.pop %v1627
      %v1629 = vmul.f32 %v1624, %v1628
      %v1630 = vsub.f32 1.0, %v1629
      %v1631 = vmul.f32 %v1611, %v1630
      %v1632 = vadd.f32 %v1631, 1.0
      %v1633 = vmul.f32 %v1608, %v1632
      %v1634 = vld [vmem:[%s14] sm:$0xff]
      %v1635 = vld [vmem:[%s14 + $0x8] sm:$0xff]
      %v1636 = vld [vmem:[%s14 + $0x10] sm:$0xff]
      %v1637 = vld [vmem:[%s14 + $0x18] sm:$0xff]
      %v1638 = vld [vmem:[%s14 + $0x20] sm:$0xff]
      %v1639 = vld [vmem:[%s14 + $0x28] sm:$0xff]
      %v1640 = vld [vmem:[%s14 + $0x30] sm:$0xff]
      %v1641 = vld [vmem:[%s14 + $0x38] sm:$0xff]
      %v1642 = vld [vmem:[%s14 + $0x40] sm:$0xff]
      %v1643 = vld [vmem:[%s14 + $0x48] sm:$0xff]
      %v1644 = vld [vmem:[%s14 + $0x50] sm:$0xff]
      %v1645 = vld [vmem:[%s14 + $0x58] sm:$0xff]
      %v1646 = vld [vmem:[%s14 + $0x60] sm:$0xff]
      %v1647 = vld [vmem:[%s14 + $0x68] sm:$0xff]
      %v1648 = vld [vmem:[%s14 + $0x70] sm:$0xff]
      %v1649 = vld [vmem:[%s14 + $0x78] sm:$0xff]
      %v1650 = vld [vmem:[%s15] sm:$0x1]
      %v1652 = vlaneseq
      %v1653 = vshrl.u32 %v1652, 7
      %v1654 = vsub.s32 0, %v1653
      %v1655 = vrot.slane %v1650, %v1654
      %1657 = vmatprep.subr.mxu0 0.0
      %1658 = vmatpush1.msra.mxu0 %v1649
      %1659 = vmatprep.subr.mxu0 0.0
      %1660 = vmatpush1.msra.mxu0 %v1648
      %1661 = vmatprep.subr.mxu0 0.0
      %1662 = vmatpush1.msra.mxu0 %v1647
      %1663 = vmatprep.subr.mxu0 0.0
      %1664 = vmatpush1.msra.mxu0 %v1646
      %1665 = vmatprep.subr.mxu0 0.0
      %1666 = vmatpush1.msra.mxu0 %v1645
      %1667 = vmatprep.subr.mxu0 0.0
      %1668 = vmatpush1.msra.mxu0 %v1644
      %1669 = vmatprep.subr.mxu0 0.0
      %1670 = vmatpush1.msra.mxu0 %v1643
      %1671 = vmatprep.subr.mxu0 0.0
      %1672 = vmatpush1.msra.mxu0 %v1642
      %1673 = vmatprep.subr.mxu0 0.0
      %1674 = vmatpush1.msra.mxu0 %v1641
      %1675 = vmatprep.subr.mxu0 0.0
      %1676 = vmatpush1.msra.mxu0 %v1640
      %1677 = vmatprep.subr.mxu0 0.0
      %1678 = vmatpush1.msra.mxu0 %v1639
      %1679 = vmatprep.subr.mxu0 0.0
      %1680 = vmatpush1.msra.mxu0 %v1638
      %1681 = vmatprep.subr.mxu0 0.0
      %1682 = vmatpush1.msra.mxu0 %v1637
      %1683 = vmatprep.subr.mxu0 0.0
      %1684 = vmatpush1.msra.mxu0 %v1636
      %1685 = vmatprep.subr.mxu0 0.0
      %1686 = vmatpush1.msra.mxu0 %v1635
      %1687 = vmatprep.subr.mxu0 0.0
      %1688 = vmatpush1.msra.mxu0 %v1634
      %1689 = vmatprep.subr.mxu0 0.0
      %1690 = vmatpush2.msra.mxu0 0.0
      %1691 = vmatprep.subr.mxu0 0.0
      %1692 = vmatpush2.msra.mxu0 0.0
      %1693 = vmatprep.subr.mxu0 0.0
      %1694 = vmatpush2.msra.mxu0 0.0
      %1695 = vmatprep.subr.mxu0 0.0
      %1696 = vmatpush2.msra.mxu0 0.0
      %1697 = vmatprep.subr.mxu0 0.0
      %1698 = vmatpush2.msra.mxu0 0.0
      %1699 = vmatprep.subr.mxu0 0.0
      %1700 = vmatpush2.msra.mxu0 0.0
      %1701 = vmatprep.subr.mxu0 0.0
      %1702 = vmatpush2.msra.mxu0 0.0
      %1703 = vmatprep.subr.mxu0 0.0
      %1704 = vmatpush2.msra.mxu0 0.0
      %1705 = vmatprep.subr.mxu0 0.0
      %1706 = vmatpush2.msra.mxu0 0.0
      %1707 = vmatprep.subr.mxu0 0.0
      %1708 = vmatpush2.msra.mxu0 0.0
      %1709 = vmatprep.subr.mxu0 0.0
      %1710 = vmatpush2.msra.mxu0 0.0
      %1711 = vmatprep.subr.mxu0 0.0
      %1712 = vmatpush2.msra.mxu0 0.0
      %1713 = vmatprep.subr.mxu0 0.0
      %1714 = vmatpush2.msra.mxu0 0.0
      %1715 = vmatprep.subr.mxu0 0.0
      %1716 = vmatpush2.msra.mxu0 0.0
      %1717 = vmatprep.subr.mxu0 0.0
      %1718 = vmatpush2.msra.mxu0 0.0
      %1719 = vmatprep.subr.mxu0 0.0
      %1720 = vmatpush2.msra.mxu0 0.0
      %1721 = vmatprep.mubr.f32.mxu0 0.0
      %1722 = vmatmul.mubr.f32.gmra.mxu0 %v1633
      %v1723 = vpop.f32.mrf.mxu0
      %v1724 = vadd.f32 %v1655, %v1723
      %v1725 = vpop.f32.mrf.mxu0
      %1726 = vdwg.mxu0
      %v1727 = vadd.f32 %v1494, %v1724
      %1728 = vst.msk [vmem:[%s530] sm:$0xff] %vm533, %v1727
      %p1729 = scmp.lt.s32.totalorder %s27, 1
      %s1730 = scalar_select %p1729, %s27, 1
      %s1731 = smul.addr %s1730, 8
      %s1732 = scalar_lea.vmem %s16, %s1731
      // Predicated region
      $region85: #{bert_forward.4} parent=83 // pred_check
        %p1733 = pneg %p391
      $region86: #{bert_forward.4} parent=83 // pred_check_branch
        %1735 = sbr.rel (%p1733) target = $region88
      $region87: #{bert_forward.4} parent=83 // pred_region
        _
      $region88: #{bert_forward.4} parent=83 // pred_fallthru
        _
    $region84: #{bert_forward.4} parent=5 // pred_fallthru
      _
    %p1736 = scmp.le.s32.totalorder 2, %s22
    // Predicated region
    $region89: #{bert_forward.4} parent=5 // pred_check
      %p1737 = pneg %p1736
    $region90: #{bert_forward.4} parent=5 // pred_check_branch
      %1739 = sbr.rel (%p1737) target = $region92
    $region91: #{bert_forward.4} parent=5 // pred_region
      %s1740 = ssub.s32 %s22, 2
      // Predicated region
      $region93: #{bert_forward.4} parent=91 // pred_check
        %p1741 = pneg %p397
      $region94: #{bert_forward.4} parent=91 // pred_check_branch
        %1743 = sbr.rel (%p1741) target = $region96
      $region95: #{bert_forward.4} parent=91 // pred_region
        %p1744 = scmp.lt.s32.totalorder %s28, 1
        %s1745 = scalar_select %p1744, %s28, 1
        %s1746 = smul.addr %s1745, 8
        %s1747 = scalar_lea.vmem %s16, %s1746
      $region96: #{bert_forward.4} parent=91 // pred_fallthru
        _
    $region92: #{bert_forward.4} parent=5 // pred_fallthru
      _
  $region6: #{bert_forward.4} parent=0 // loop_footer
    %s26 = sadd.s32 1, %s22
  $region7: #{bert_forward.4} parent=0 // loop_footer_branch
    %21 = sbr.rel target = $region3
  $region8: #{bert_forward.4} parent=0 // loop_exit
    _

</llo_original>
